<compile_context>
chip_gen: v6e
topology: v6e:2x2x1
jax: 0.10.0
libtpu: 0.0.40
codegen_flags: <defaults>
</compile_context>

<pallas_src>
import functools

import jax
import jax.numpy as jnp
from jax.experimental import pallas as pl
from jax.experimental.pallas import tpu as pltpu

# ----------------------- small Qwen2-style config -----------------------
HIDDEN = 32
N_HEADS = 4
N_KV_HEADS = 2
HEAD_DIM = HIDDEN // N_HEADS          # 8
KV_DIM = N_KV_HEADS * HEAD_DIM        # 16
QKV_EXT = 2 * HIDDEN + 3 * KV_DIM     # 112: [q | q_rot | k | k_rot | v]
INTERMEDIATE = 64
N_LAYERS = 2
RMS_EPS = 1e-6
ROPE_THETA = 10000.0
NEG_INF = -1e9                        # finite "min" like HF's finfo.min


# --------------------------- fused encoder kernel ---------------------------
def _encoder_kernel(lens_ref,                               # scalar-prefetch (SMEM)
                    h_ref, cossin_ref, norms_ref, wqkv_ref, bqkv_ref,
                    wo_ref, wgu_ref, wd_ref,
                    o_ref,
                    attn_sc, *,
                    seq_len, hidden, n_heads, n_kv_heads, head_dim, inter, eps):
    b = pl.program_id(0)
    layer = pl.program_id(1)
    last = pl.num_programs(1) - 1
    length = lens_ref[b]                                    # valid tokens in batch b

    kv_dim = n_kv_heads * head_dim
    rep = n_heads // n_kv_heads
    scale = 1.0 / (head_dim ** 0.5)

    def rmsnorm(x, w_row):                                  # x: (T, D), w_row: (1, D)
        var = jnp.mean(x * x, axis=-1, keepdims=True)
        return x * jax.lax.rsqrt(var + eps) * w_row

    # Residual stream lives in the output block, which is resident across the
    # layer axis (same block index for every layer).  Initialize it once.
    @pl.when(layer == 0)
    def _():
        o_ref[...] = h_ref[...]

    h = o_ref[0].astype(jnp.float32)                        # (T, D)

    norms = norms_ref[0].astype(jnp.float32)                # (3, D)
    ln1 = norms[0:1]
    ln2 = norms[1:2]
    lnf = norms[2:3]

    cos = cossin_ref[0].astype(jnp.float32)                 # (T, D)  per-head tiled
    sin = cossin_ref[1].astype(jnp.float32)

    # ---------------- attention block ----------------
    x = rmsnorm(h, ln1)
    qkv = jnp.dot(x, wqkv_ref[0], preferred_element_type=jnp.float32)
    qkv = qkv + bqkv_ref[0].astype(jnp.float32)             # (T, 112)

    q     = qkv[:, :hidden]
    q_rot = qkv[:, hidden:2 * hidden]
    k     = qkv[:, 2 * hidden:2 * hidden + kv_dim]
    k_rot = qkv[:, 2 * hidden + kv_dim:2 * hidden + 2 * kv_dim]
    v     = qkv[:, 2 * hidden + 2 * kv_dim:]

    # RoPE: rotate_half already folded into the weight -> purely elementwise.
    q = q * cos + q_rot * sin
    k = k * cos[:, :kv_dim] + k_rot * sin[:, :kv_dim]

    # causal + key-padding mask built in-kernel from xs_lens (no HBM bias tensor)
    row = jax.lax.broadcasted_iota(jnp.int32, (seq_len, seq_len), 0)
    col = jax.lax.broadcasted_iota(jnp.int32, (seq_len, seq_len), 1)
    bias = jnp.where((col <= row) & (col < length), 0.0, NEG_INF)

    for hi in range(n_heads):                               # tiny, unrolled
        g = hi // rep                                       # GQA: shared KV head
        q_h = q[:, hi * head_dim:(hi + 1) * head_dim]
        k_g = k[:, g * head_dim:(g + 1) * head_dim]
        v_g = v[:, g * head_dim:(g + 1) * head_dim]

        # contract on the last dims -> no explicit transpose of k
        s = jax.lax.dot_general(q_h, k_g, (((1,), (1,)), ((), ())),
                                preferred_element_type=jnp.float32)
        s = s * scale + bias
        s = s - jnp.max(s, axis=-1, keepdims=True)
        p = jnp.exp(s)
        p = p * pl.reciprocal(jnp.sum(p, axis=-1, keepdims=True), approx=True)
        attn_sc[:, hi * head_dim:(hi + 1) * head_dim] = jnp.dot(
            p, v_g, preferred_element_type=jnp.float32)

    # single output-projection matmul over the concatenated heads
    h = h + jnp.dot(attn_sc[...], wo_ref[0], preferred_element_type=jnp.float32)

    # ---------------- MLP block (SwiGLU) ----------------
    x2 = rmsnorm(h, ln2)
    gu = jnp.dot(x2, wgu_ref[0], preferred_element_type=jnp.float32)
    gate = gu[:, :inter]
    up = gu[:, inter:]
    h = h + jnp.dot(gate * jax.nn.sigmoid(gate) * up, wd_ref[0],
                    preferred_element_type=jnp.float32)

    @pl.when(layer < last)
    def _():
        o_ref[0] = h.astype(o_ref.dtype)

    @pl.when(layer == last)                                 # fuse final RMSNorm
    def _():
        o_ref[0] = rmsnorm(h, lnf).astype(o_ref.dtype)


def qwen2_encoder_pallas(xs, xs_lens, packed):
    B, T, D = xs.shape
    L = packed["wqkv"].shape[0]

    cos, sin = rope_cos_sin(T, HEAD_DIM)                    # (T, Dh)
    cossin = jnp.stack([jnp.tile(cos, (1, N_HEADS)),
                        jnp.tile(sin, (1, N_HEADS))], axis=0)   # (2, T, D)

    kernel = functools.partial(
        _encoder_kernel,
        seq_len=T, hidden=D, n_heads=N_HEADS, n_kv_heads=N_KV_HEADS,
        head_dim=HEAD_DIM, inter=INTERMEDIATE, eps=RMS_EPS)

    grid_spec = pltpu.PrefetchScalarGridSpec(
        num_scalar_prefetch=1,
        grid=(B, L),
        in_specs=[
            pl.BlockSpec((1, T, D), lambda b, l, lens: (b, 0, 0)),            # xs
            pl.BlockSpec((2, T, D), lambda b, l, lens: (0, 0, 0)),            # cos/sin
            pl.BlockSpec((1, 3, D), lambda b, l, lens: (l, 0, 0)),            # ln1/ln2/lnf
            pl.BlockSpec((1, D, QKV_EXT), lambda b, l, lens: (l, 0, 0)),      # wqkv (+rot)
            pl.BlockSpec((1, 1, QKV_EXT), lambda b, l, lens: (l, 0, 0)),      # bqkv (+rot)
            pl.BlockSpec((1, D, D), lambda b, l, lens: (l, 0, 0)),            # wo
            pl.BlockSpec((1, D, 2 * INTERMEDIATE), lambda b, l, lens: (l, 0, 0)),  # wgu
            pl.BlockSpec((1, INTERMEDIATE, D), lambda b, l, lens: (l, 0, 0)),      # wd
        ],
        out_specs=pl.BlockSpec((1, T, D), lambda b, l, lens: (b, 0, 0)),
        scratch_shapes=[pltpu.VMEM((T, D), jnp.float32)],
    )
    return pl.pallas_call(
        kernel,
        out_shape=jax.ShapeDtypeStruct((B, T, D), xs.dtype),
        grid_spec=grid_spec,
        compiler_params=pltpu.CompilerParams(
            dimension_semantics=("parallel", "arbitrary")),
    )(xs_lens, xs, cossin, packed["norms"], packed["wqkv"], packed["bqkv"],
      packed["wo"], packed["wgu"], packed["wd"])


# ------------------------------- glue (JAX) -------------------------------
def rope_cos_sin(T, dim, theta=ROPE_THETA):
    inv_freq = 1.0 / (theta ** (jnp.arange(0, dim, 2, dtype=jnp.float32) / dim))
    pos = jnp.arange(T, dtype=jnp.float32)
    freqs = jnp.outer(pos, inv_freq)                        # (T, dim/2)
    emb = jnp.concatenate([freqs, freqs], axis=-1)          # (T, dim)
    return jnp.cos(emb), jnp.sin(emb)


def rotate_half_matrix(n_heads, head_dim):
    """Block-diagonal R such that  rotate_half(x) == x @ R  per head."""
    half = head_dim // 2
    idx = jnp.arange(half)
    blk = jnp.zeros((head_dim, head_dim), jnp.float32)
    blk = blk.at[idx, idx + half].set(1.0)
    blk = blk.at[idx + half, idx].set(-1.0)
    return jnp.kron(jnp.eye(n_heads, dtype=jnp.float32), blk)


def pack_params(params):
    """Stack per-layer weights with a leading layer axis and fold RoPE's
    rotate_half matmul into the fused QKV weight/bias."""
    rot = rotate_half_matrix(N_HEADS, HEAD_DIM)             # (D, D)
    rot_kv = rot[:KV_DIM, :KV_DIM]
    wqkv, bqkv, norms, wo, wgu, wd = [], [], [], [], [], []
    for lp in params["layers"]:
        wq = lp["wqkv"][:, :HIDDEN]
        wk = lp["wqkv"][:, HIDDEN:HIDDEN + KV_DIM]
        wv = lp["wqkv"][:, HIDDEN + KV_DIM:]
        bq = lp["bqkv"][:HIDDEN]
        bk = lp["bqkv"][HIDDEN:HIDDEN + KV_DIM]
        bv = lp["bqkv"][HIDDEN + KV_DIM:]
        wqkv.append(jnp.concatenate([wq, wq @ rot, wk, wk @ rot_kv, wv], axis=1))
        bqkv.append(jnp.concatenate([bq, bq @ rot, bk, bk @ rot_kv, bv],
                                    axis=0)[None, :])
        norms.append(jnp.stack([lp["ln1"], lp["ln2"], params["final_norm"]], axis=0))
        wo.append(lp["wo"])
        wgu.append(lp["wgu"])
        wd.append(lp["wd"])
    return dict(wqkv=jnp.stack(wqkv),                       # (L, D, 112)
                bqkv=jnp.stack(bqkv),                       # (L, 1, 112)
                norms=jnp.stack(norms),                     # (L, 3, D)
                wo=jnp.stack(wo),                           # (L, D, D)
                wgu=jnp.stack(wgu),                         # (L, D, 2I)
                wd=jnp.stack(wd))                           # (L, I, D)


def qwen2_encoder_forward(xs, xs_lens, packed, emotion_feature=None):
    """Equivalent of Qwen2Encoder.forward: returns (hidden_states[-1], emotion_feature)."""
    hidden = qwen2_encoder_pallas(xs, xs_lens, packed)
    return hidden, emotion_feature


# --------------------------- pure-JAX reference ---------------------------
def reference_forward(xs, xs_lens, params):
    B, T, D = xs.shape
    valid = jnp.arange(T, dtype=jnp.int32)[None, :] < xs_lens[:, None]
    causal = jnp.tril(jnp.ones((T, T), dtype=bool))
    bias = jnp.where(causal[None] & valid[:, None, :], 0.0, NEG_INF)[:, None]
    cos, sin = rope_cos_sin(T, HEAD_DIM)

    def rms(x, w):
        var = jnp.mean(x * x, axis=-1, keepdims=True)
        return x * jax.lax.rsqrt(var + RMS_EPS) * w

    def rot_half(x):
        d = x.shape[-1] // 2
        return jnp.concatenate([-x[..., d:], x[..., :d]], axis=-1)

    def rope(x):                                            # (B, H, T, Dh)
        return x * cos[None, None] + rot_half(x) * sin[None, None]

    rep = N_HEADS // N_KV_HEADS
    h = xs
    for p in params["layers"]:
        x = rms(h, p["ln1"])
        qkv = x @ p["wqkv"] + p["bqkv"]
        q = qkv[..., :HIDDEN].reshape(B, T, N_HEADS, HEAD_DIM).transpose(0, 2, 1, 3)
        k = qkv[..., HIDDEN:HIDDEN + KV_DIM].reshape(B, T, N_KV_HEADS, HEAD_DIM).transpose(0, 2, 1, 3)
        v = qkv[..., HIDDEN + KV_DIM:].reshape(B, T, N_KV_HEADS, HEAD_DIM).transpose(0, 2, 1, 3)
        q, k = rope(q), rope(k)
        k = jnp.repeat(k, rep, axis=1)
        v = jnp.repeat(v, rep, axis=1)
        s = jnp.einsum("bhqd,bhkd->bhqk", q, k) / (HEAD_DIM ** 0.5) + bias
        a = jax.nn.softmax(s, axis=-1)
        o = jnp.einsum("bhqk,bhkd->bhqd", a, v).transpose(0, 2, 1, 3).reshape(B, T, D)
        h = h + o @ p["wo"]
        x2 = rms(h, p["ln2"])
        gu = x2 @ p["wgu"]
        g, u = gu[..., :INTERMEDIATE], gu[..., INTERMEDIATE:]
        h = h + (g * jax.nn.sigmoid(g) * u) @ p["wd"]
    return rms(h, params["final_norm"])


# ------------------------- deterministic param init -------------------------
def init_params(key):
    def dense(k, shape, scale=0.05):
        return scale * jax.random.normal(k, shape, dtype=jnp.float32)

    layers = []
    for _ in range(N_LAYERS):
        key, *ks = jax.random.split(key, 11)
        wq, bq = dense(ks[0], (HIDDEN, HIDDEN)), dense(ks[1], (HIDDEN,))
        wk, bk = dense(ks[2], (HIDDEN, KV_DIM)), dense(ks[3], (KV_DIM,))
        wv, bv = dense(ks[4], (HIDDEN, KV_DIM)), dense(ks[5], (KV_DIM,))
        layers.append(dict(
            ln1=jnp.ones((HIDDEN,), jnp.float32),
            ln2=jnp.ones((HIDDEN,), jnp.float32),
            wqkv=jnp.concatenate([wq, wk, wv], axis=1),      # (D, D+2*KV)
            bqkv=jnp.concatenate([bq, bk, bv], axis=0),      # (D+2*KV,)
            wo=dense(ks[6], (HIDDEN, HIDDEN)),
            wgu=jnp.concatenate([dense(ks[7], (HIDDEN, INTERMEDIATE)),
                                 dense(ks[8], (HIDDEN, INTERMEDIATE))], axis=1),
            wd=dense(ks[9], (INTERMEDIATE, HIDDEN)),
        ))
    return dict(layers=layers, final_norm=jnp.ones((HIDDEN,), jnp.float32))


# ----------------------------------- main -----------------------------------
if __name__ == "__main__":
    key = jax.random.PRNGKey(0)
    k_x, k_p = jax.random.split(key)

    B, T = 2, 8
    xs = jax.random.normal(k_x, (B, T, HIDDEN), dtype=jnp.float32)
    xs_lens = jnp.array([8, 5], dtype=jnp.int32)
    params = init_params(k_p)
    packed = pack_params(params)

    fwd = jax.jit(functools.partial(qwen2_encoder_forward, packed=packed))
    hidden, emotion_feature = fwd(xs, xs_lens)
    jax.block_until_ready(hidden)

    ref = reference_forward(xs, xs_lens, params)

    assert hidden.shape == (B, T, HIDDEN)
    assert bool(jnp.all(jnp.isfinite(hidden)))
    assert bool(jnp.allclose(hidden, ref, rtol=2e-2, atol=2e-2)), \
        float(jnp.max(jnp.abs(hidden - ref)))
    print("KERNEL_OK")
</pallas_src>

<mosaic_0001>
module attributes {stable_mosaic.version = 11 : i64} {
  func.func @_encoder_kernel(%arg0: i32, %arg1: i32, %arg2: memref<2xi32, #tpu.memory_space<smem>>, %arg3: memref<1x8x32xf32, #tpu.memory_space<vmem>>, %arg4: memref<2x8x32xf32, #tpu.memory_space<vmem>>, %arg5: memref<1x3x32xf32, #tpu.memory_space<vmem>>, %arg6: memref<1x32x112xf32, #tpu.memory_space<vmem>>, %arg7: memref<1x1x112xf32, #tpu.memory_space<vmem>>, %arg8: memref<1x32x32xf32, #tpu.memory_space<vmem>>, %arg9: memref<1x32x128xf32, #tpu.memory_space<vmem>>, %arg10: memref<1x64x32xf32, #tpu.memory_space<vmem>>, %arg11: memref<1x8x32xf32, #tpu.memory_space<vmem>>, %arg12: memref<8x32xf32, #tpu.memory_space<vmem>>) attributes {dimension_semantics = [#tpu.dimension_semantics<parallel>, #tpu.dimension_semantics<arbitrary>], iteration_bounds = array<i64: 2, 2>, scalar_prefetch = 1 : i64, scratch_operands = 1 : i64, tpu.core_type = #tpu.core_type<tc>, window_params = [{transform_indices = @transform_0, window_bounds = array<i64: 1, 8, 32>}, {pipeline_mode = #tpu.pipeline_mode<synchronous>, transform_indices = @transform_1, window_bounds = array<i64: 2, 8, 32>}, {transform_indices = @transform_2, window_bounds = array<i64: 1, 3, 32>}, {transform_indices = @transform_3, window_bounds = array<i64: 1, 32, 112>}, {transform_indices = @transform_4, window_bounds = array<i64: 1, 1, 112>}, {transform_indices = @transform_5, window_bounds = array<i64: 1, 32, 32>}, {transform_indices = @transform_6, window_bounds = array<i64: 1, 32, 128>}, {transform_indices = @transform_7, window_bounds = array<i64: 1, 64, 32>}, {transform_indices = @transform_8, window_bounds = array<i64: 1, 8, 32>}]} {
    %0 = arith.index_cast %arg0 : i32 to index
    %1 = memref.load %arg2[%0] : memref<2xi32, #tpu.memory_space<smem>>
    %c0_i32 = arith.constant 0 : i32
    %2 = arith.cmpi eq, %arg1, %c0_i32 : i32
    %3 = arith.extui %2 : i1 to i32
    %c0_i32_0 = arith.constant 0 : i32
    %4 = arith.cmpi ne, %3, %c0_i32_0 : i32
    scf.if %4 {
      %c0_68 = arith.constant 0 : index
      %c0_69 = arith.constant 0 : index
      %c0_70 = arith.constant 0 : index
      %172 = vector.load %arg3[%c0_68, %c0_69, %c0_70] : memref<1x8x32xf32, #tpu.memory_space<vmem>>, vector<1x8x32xf32>
      %c0_71 = arith.constant 0 : index
      %c0_72 = arith.constant 0 : index
      %c0_73 = arith.constant 0 : index
      %173 = vector.load %arg11[%c0_71, %c0_72, %c0_73] : memref<1x8x32xf32, #tpu.memory_space<vmem>>, vector<1x8x32xf32>
      tpu.vector_store %arg11[%c0_71, %c0_72, %c0_73], %172 {strides = array<i32>} : memref<1x8x32xf32, #tpu.memory_space<vmem>>, vector<1x8x32xf32>,
    } else {
    }
    %c0 = arith.constant 0 : index
    %c0_1 = arith.constant 0 : index
    %c0_2 = arith.constant 0 : index
    %5 = vector.load %arg11[%c0, %c0_1, %c0_2] : memref<1x8x32xf32, #tpu.memory_space<vmem>>, vector<1x8x32xf32>
    %6 = vector.shape_cast %5 : vector<1x8x32xf32> to vector<8x32xf32>
    %c0_3 = arith.constant 0 : index
    %c0_4 = arith.constant 0 : index
    %c0_5 = arith.constant 0 : index
    %7 = vector.load %arg5[%c0_3, %c0_4, %c0_5] : memref<1x3x32xf32, #tpu.memory_space<vmem>>, vector<1x3x32xf32>
    %8 = vector.shape_cast %7 : vector<1x3x32xf32> to vector<3x32xf32>
    %9 = vector.extract_strided_slice %8 {offsets = [0, 0], sizes = [1, 32], strides = [1, 1]} : vector<3x32xf32> to vector<1x32xf32>
    %10 = vector.extract_strided_slice %8 {offsets = [1, 0], sizes = [1, 32], strides = [1, 1]} : vector<3x32xf32> to vector<1x32xf32>
    %11 = vector.extract_strided_slice %8 {offsets = [2, 0], sizes = [1, 32], strides = [1, 1]} : vector<3x32xf32> to vector<1x32xf32>
    %c0_6 = arith.constant 0 : index
    %c0_7 = arith.constant 0 : index
    %c0_8 = arith.constant 0 : index
    %12 = vector.load %arg4[%c0_6, %c0_7, %c0_8] : memref<2x8x32xf32, #tpu.memory_space<vmem>>, vector<1x8x32xf32>
    %13 = vector.shape_cast %12 : vector<1x8x32xf32> to vector<8x32xf32>
    %c1 = arith.constant 1 : index
    %c0_9 = arith.constant 0 : index
    %c0_10 = arith.constant 0 : index
    %14 = vector.load %arg4[%c1, %c0_9, %c0_10] : memref<2x8x32xf32, #tpu.memory_space<vmem>>, vector<1x8x32xf32>
    %15 = vector.shape_cast %14 : vector<1x8x32xf32> to vector<8x32xf32>
    %16 = arith.mulf %6, %6 : vector<8x32xf32>
    %cst = arith.constant dense<0.000000e+00> : vector<8xf32>
    %17 = vector.multi_reduction <add>, %16, %cst [1] : vector<8x32xf32> to vector<8xf32>
    %18 = vector.shape_cast %17 : vector<8xf32> to vector<8x1xf32>
    %cst_11 = arith.constant 3.200000e+01 : f32
    %19 = vector.broadcast %cst_11 : f32 to vector<8x1xf32>
    %20 = arith.divf %18, %19 : vector<8x1xf32>
    %cst_12 = arith.constant 9.99999997E-7 : f32
    %21 = vector.broadcast %cst_12 : f32 to vector<8x1xf32>
    %22 = arith.addf %20, %21 : vector<8x1xf32>
    %23 = math.rsqrt %22 : vector<8x1xf32>
    %24 = vector.broadcast %23 : vector<8x1xf32> to vector<8x32xf32>
    %25 = arith.mulf %6, %24 : vector<8x32xf32>
    %26 = vector.broadcast %9 : vector<1x32xf32> to vector<8x32xf32>
    %27 = arith.mulf %25, %26 : vector<8x32xf32>
    %c0_13 = arith.constant 0 : index
    %c0_14 = arith.constant 0 : index
    %c0_15 = arith.constant 0 : index
    %28 = vector.load %arg6[%c0_13, %c0_14, %c0_15] : memref<1x32x112xf32, #tpu.memory_space<vmem>>, vector<1x32x112xf32>
    %29 = vector.shape_cast %28 : vector<1x32x112xf32> to vector<32x112xf32>
    %cst_16 = arith.constant dense<0.000000e+00> : vector<8x112xf32>
    %30 = tpu.matmul %27, %29, %cst_16 {dimension_numbers = #tpu.dot_dimension_numbers<[1], [0], [0], [1], [0, 0, 1, 1], [], []>} : vector<8x32xf32>, vector<32x112xf32>, vector<8x112xf32> -> vector<8x112xf32>
    %c0_17 = arith.constant 0 : index
    %c0_18 = arith.constant 0 : index
    %c0_19 = arith.constant 0 : index
    %31 = vector.load %arg7[%c0_17, %c0_18, %c0_19] : memref<1x1x112xf32, #tpu.memory_space<vmem>>, vector<1x1x112xf32>
    %32 = vector.shape_cast %31 : vector<1x1x112xf32> to vector<1x112xf32>
    %33 = vector.broadcast %32 : vector<1x112xf32> to vector<8x112xf32>
    %34 = arith.addf %30, %33 : vector<8x112xf32>
    %35 = vector.extract_strided_slice %34 {offsets = [0, 0], sizes = [8, 32], strides = [1, 1]} : vector<8x112xf32> to vector<8x32xf32>
    %36 = vector.extract_strided_slice %34 {offsets = [0, 32], sizes = [8, 32], strides = [1, 1]} : vector<8x112xf32> to vector<8x32xf32>
    %37 = vector.extract_strided_slice %34 {offsets = [0, 64], sizes = [8, 16], strides = [1, 1]} : vector<8x112xf32> to vector<8x16xf32>
    %38 = vector.extract_strided_slice %34 {offsets = [0, 80], sizes = [8, 16], strides = [1, 1]} : vector<8x112xf32> to vector<8x16xf32>
    %39 = vector.extract_strided_slice %34 {offsets = [0, 96], sizes = [8, 16], strides = [1, 1]} : vector<8x112xf32> to vector<8x16xf32>
    %40 = arith.mulf %35, %13 : vector<8x32xf32>
    %41 = arith.mulf %36, %15 : vector<8x32xf32>
    %42 = arith.addf %40, %41 : vector<8x32xf32>
    %43 = vector.extract_strided_slice %13 {offsets = [0, 0], sizes = [8, 16], strides = [1, 1]} : vector<8x32xf32> to vector<8x16xf32>
    %44 = arith.mulf %37, %43 : vector<8x16xf32>
    %45 = vector.extract_strided_slice %15 {offsets = [0, 0], sizes = [8, 16], strides = [1, 1]} : vector<8x32xf32> to vector<8x16xf32>
    %46 = arith.mulf %38, %45 : vector<8x16xf32>
    %47 = arith.addf %44, %46 : vector<8x16xf32>
    %48 = tpu.iota {dimensions = array<i32: 0>} : vector<8x8xi32>
    %49 = tpu.iota {dimensions = array<i32: 1>} : vector<8x8xi32>
    %50 = arith.cmpi sle, %49, %48 : vector<8x8xi32>
    %51 = vector.broadcast %1 : i32 to vector<8x8xi32>
    %52 = arith.cmpi slt, %49, %51 : vector<8x8xi32>
    %53 = arith.andi %50, %52 : vector<8x8xi1>
    %cst_20 = arith.constant 0.000000e+00 : f32
    %cst_21 = arith.constant -1.000000e+09 : f32
    %54 = vector.broadcast %cst_20 : f32 to vector<8x8xf32>
    %55 = vector.broadcast %cst_21 : f32 to vector<8x8xf32>
    %56 = arith.select %53, %54, %55 : vector<8x8xi1>, vector<8x8xf32>
    %57 = vector.extract_strided_slice %42 {offsets = [0, 0], sizes = [8, 8], strides = [1, 1]} : vector<8x32xf32> to vector<8x8xf32>
    %58 = vector.extract_strided_slice %47 {offsets = [0, 0], sizes = [8, 8], strides = [1, 1]} : vector<8x16xf32> to vector<8x8xf32>
    %59 = vector.extract_strided_slice %39 {offsets = [0, 0], sizes = [8, 8], strides = [1, 1]} : vector<8x16xf32> to vector<8x8xf32>
    %cst_22 = arith.constant dense<0.000000e+00> : vector<8x8xf32>
    %60 = tpu.matmul %57, %58, %cst_22 {dimension_numbers = #tpu.dot_dimension_numbers<[1], [1], [0], [0], [0, 0, 1, 0], [], []>} : vector<8x8xf32>, vector<8x8xf32>, vector<8x8xf32> -> vector<8x8xf32>
    %cst_23 = arith.constant 0.353553385 : f32
    %61 = vector.broadcast %cst_23 : f32 to vector<8x8xf32>
    %62 = arith.mulf %60, %61 : vector<8x8xf32>
    %63 = arith.addf %62, %56 : vector<8x8xf32>
    %cst_24 = arith.constant dense<0xFF800000> : vector<8xf32>
    %64 = vector.multi_reduction <maximumf>, %63, %cst_24 [1] : vector<8x8xf32> to vector<8xf32>
    %65 = vector.shape_cast %64 : vector<8xf32> to vector<8x1xf32>
    %66 = vector.broadcast %65 : vector<8x1xf32> to vector<8x8xf32>
    %67 = arith.subf %63, %66 : vector<8x8xf32>
    %68 = math.exp %67 : vector<8x8xf32>
    %cst_25 = arith.constant dense<0.000000e+00> : vector<8xf32>
    %69 = vector.multi_reduction <add>, %68, %cst_25 [1] : vector<8x8xf32> to vector<8xf32>
    %70 = vector.shape_cast %69 : vector<8xf32> to vector<8x1xf32>
    %71 = tpu.reciprocal %70 {approx = true} : vector<8x1xf32> -> vector<8x1xf32>
    %72 = vector.broadcast %71 : vector<8x1xf32> to vector<8x8xf32>
    %73 = arith.mulf %68, %72 : vector<8x8xf32>
    %cst_26 = arith.constant dense<0.000000e+00> : vector<8x8xf32>
    %74 = tpu.matmul %73, %59, %cst_26 {dimension_numbers = #tpu.dot_dimension_numbers<[1], [0], [0], [1], [0, 0, 1, 1], [], []>} : vector<8x8xf32>, vector<8x8xf32>, vector<8x8xf32> -> vector<8x8xf32>
    %c0_27 = arith.constant 0 : index
    %c0_28 = arith.constant 0 : index
    %75 = vector.load %arg12[%c0_27, %c0_28] : memref<8x32xf32, #tpu.memory_space<vmem>>, vector<8x8xf32>
    tpu.vector_store %arg12[%c0_27, %c0_28], %74 {strides = array<i32>} : memref<8x32xf32, #tpu.memory_space<vmem>>, vector<8x8xf32>,
    %76 = vector.extract_strided_slice %42 {offsets = [0, 8], sizes = [8, 8], strides = [1, 1]} : vector<8x32xf32> to vector<8x8xf32>
    %77 = vector.extract_strided_slice %47 {offsets = [0, 0], sizes = [8, 8], strides = [1, 1]} : vector<8x16xf32> to vector<8x8xf32>
    %78 = vector.extract_strided_slice %39 {offsets = [0, 0], sizes = [8, 8], strides = [1, 1]} : vector<8x16xf32> to vector<8x8xf32>
    %cst_29 = arith.constant dense<0.000000e+00> : vector<8x8xf32>
    %79 = tpu.matmul %76, %77, %cst_29 {dimension_numbers = #tpu.dot_dimension_numbers<[1], [1], [0], [0], [0, 0, 1, 0], [], []>} : vector<8x8xf32>, vector<8x8xf32>, vector<8x8xf32> -> vector<8x8xf32>
    %cst_30 = arith.constant 0.353553385 : f32
    %80 = vector.broadcast %cst_30 : f32 to vector<8x8xf32>
    %81 = arith.mulf %79, %80 : vector<8x8xf32>
    %82 = arith.addf %81, %56 : vector<8x8xf32>
    %cst_31 = arith.constant dense<0xFF800000> : vector<8xf32>
    %83 = vector.multi_reduction <maximumf>, %82, %cst_31 [1] : vector<8x8xf32> to vector<8xf32>
    %84 = vector.shape_cast %83 : vector<8xf32> to vector<8x1xf32>
    %85 = vector.broadcast %84 : vector<8x1xf32> to vector<8x8xf32>
    %86 = arith.subf %82, %85 : vector<8x8xf32>
    %87 = math.exp %86 : vector<8x8xf32>
    %cst_32 = arith.constant dense<0.000000e+00> : vector<8xf32>
    %88 = vector.multi_reduction <add>, %87, %cst_32 [1] : vector<8x8xf32> to vector<8xf32>
    %89 = vector.shape_cast %88 : vector<8xf32> to vector<8x1xf32>
    %90 = tpu.reciprocal %89 {approx = true} : vector<8x1xf32> -> vector<8x1xf32>
    %91 = vector.broadcast %90 : vector<8x1xf32> to vector<8x8xf32>
    %92 = arith.mulf %87, %91 : vector<8x8xf32>
    %cst_33 = arith.constant dense<0.000000e+00> : vector<8x8xf32>
    %93 = tpu.matmul %92, %78, %cst_33 {dimension_numbers = #tpu.dot_dimension_numbers<[1], [0], [0], [1], [0, 0, 1, 1], [], []>} : vector<8x8xf32>, vector<8x8xf32>, vector<8x8xf32> -> vector<8x8xf32>
    %c0_34 = arith.constant 0 : index
    %c8 = arith.constant 8 : index
    %94 = vector.load %arg12[%c0_34, %c8] : memref<8x32xf32, #tpu.memory_space<vmem>>, vector<8x8xf32>
    tpu.vector_store %arg12[%c0_34, %c8], %93 {strides = array<i32>} : memref<8x32xf32, #tpu.memory_space<vmem>>, vector<8x8xf32>,
    %95 = vector.extract_strided_slice %42 {offsets = [0, 16], sizes = [8, 8], strides = [1, 1]} : vector<8x32xf32> to vector<8x8xf32>
    %96 = vector.extract_strided_slice %47 {offsets = [0, 8], sizes = [8, 8], strides = [1, 1]} : vector<8x16xf32> to vector<8x8xf32>
    %97 = vector.extract_strided_slice %39 {offsets = [0, 8], sizes = [8, 8], strides = [1, 1]} : vector<8x16xf32> to vector<8x8xf32>
    %cst_35 = arith.constant dense<0.000000e+00> : vector<8x8xf32>
    %98 = tpu.matmul %95, %96, %cst_35 {dimension_numbers = #tpu.dot_dimension_numbers<[1], [1], [0], [0], [0, 0, 1, 0], [], []>} : vector<8x8xf32>, vector<8x8xf32>, vector<8x8xf32> -> vector<8x8xf32>
    %cst_36 = arith.constant 0.353553385 : f32
    %99 = vector.broadcast %cst_36 : f32 to vector<8x8xf32>
    %100 = arith.mulf %98, %99 : vector<8x8xf32>
    %101 = arith.addf %100, %56 : vector<8x8xf32>
    %cst_37 = arith.constant dense<0xFF800000> : vector<8xf32>
    %102 = vector.multi_reduction <maximumf>, %101, %cst_37 [1] : vector<8x8xf32> to vector<8xf32>
    %103 = vector.shape_cast %102 : vector<8xf32> to vector<8x1xf32>
    %104 = vector.broadcast %103 : vector<8x1xf32> to vector<8x8xf32>
    %105 = arith.subf %101, %104 : vector<8x8xf32>
    %106 = math.exp %105 : vector<8x8xf32>
    %cst_38 = arith.constant dense<0.000000e+00> : vector<8xf32>
    %107 = vector.multi_reduction <add>, %106, %cst_38 [1] : vector<8x8xf32> to vector<8xf32>
    %108 = vector.shape_cast %107 : vector<8xf32> to vector<8x1xf32>
    %109 = tpu.reciprocal %108 {approx = true} : vector<8x1xf32> -> vector<8x1xf32>
    %110 = vector.broadcast %109 : vector<8x1xf32> to vector<8x8xf32>
    %111 = arith.mulf %106, %110 : vector<8x8xf32>
    %cst_39 = arith.constant dense<0.000000e+00> : vector<8x8xf32>
    %112 = tpu.matmul %111, %97, %cst_39 {dimension_numbers = #tpu.dot_dimension_numbers<[1], [0], [0], [1], [0, 0, 1, 1], [], []>} : vector<8x8xf32>, vector<8x8xf32>, vector<8x8xf32> -> vector<8x8xf32>
    %c0_40 = arith.constant 0 : index
    %c16 = arith.constant 16 : index
    %113 = vector.load %arg12[%c0_40, %c16] : memref<8x32xf32, #tpu.memory_space<vmem>>, vector<8x8xf32>
    tpu.vector_store %arg12[%c0_40, %c16], %112 {strides = array<i32>} : memref<8x32xf32, #tpu.memory_space<vmem>>, vector<8x8xf32>,
    %114 = vector.extract_strided_slice %42 {offsets = [0, 24], sizes = [8, 8], strides = [1, 1]} : vector<8x32xf32> to vector<8x8xf32>
    %115 = vector.extract_strided_slice %47 {offsets = [0, 8], sizes = [8, 8], strides = [1, 1]} : vector<8x16xf32> to vector<8x8xf32>
    %116 = vector.extract_strided_slice %39 {offsets = [0, 8], sizes = [8, 8], strides = [1, 1]} : vector<8x16xf32> to vector<8x8xf32>
    %cst_41 = arith.constant dense<0.000000e+00> : vector<8x8xf32>
    %117 = tpu.matmul %114, %115, %cst_41 {dimension_numbers = #tpu.dot_dimension_numbers<[1], [1], [0], [0], [0, 0, 1, 0], [], []>} : vector<8x8xf32>, vector<8x8xf32>, vector<8x8xf32> -> vector<8x8xf32>
    %cst_42 = arith.constant 0.353553385 : f32
    %118 = vector.broadcast %cst_42 : f32 to vector<8x8xf32>
    %119 = arith.mulf %117, %118 : vector<8x8xf32>
    %120 = arith.addf %119, %56 : vector<8x8xf32>
    %cst_43 = arith.constant dense<0xFF800000> : vector<8xf32>
    %121 = vector.multi_reduction <maximumf>, %120, %cst_43 [1] : vector<8x8xf32> to vector<8xf32>
    %122 = vector.shape_cast %121 : vector<8xf32> to vector<8x1xf32>
    %123 = vector.broadcast %122 : vector<8x1xf32> to vector<8x8xf32>
    %124 = arith.subf %120, %123 : vector<8x8xf32>
    %125 = math.exp %124 : vector<8x8xf32>
    %cst_44 = arith.constant dense<0.000000e+00> : vector<8xf32>
    %126 = vector.multi_reduction <add>, %125, %cst_44 [1] : vector<8x8xf32> to vector<8xf32>
    %127 = vector.shape_cast %126 : vector<8xf32> to vector<8x1xf32>
    %128 = tpu.reciprocal %127 {approx = true} : vector<8x1xf32> -> vector<8x1xf32>
    %129 = vector.broadcast %128 : vector<8x1xf32> to vector<8x8xf32>
    %130 = arith.mulf %125, %129 : vector<8x8xf32>
    %cst_45 = arith.constant dense<0.000000e+00> : vector<8x8xf32>
    %131 = tpu.matmul %130, %116, %cst_45 {dimension_numbers = #tpu.dot_dimension_numbers<[1], [0], [0], [1], [0, 0, 1, 1], [], []>} : vector<8x8xf32>, vector<8x8xf32>, vector<8x8xf32> -> vector<8x8xf32>
    %c0_46 = arith.constant 0 : index
    %c24 = arith.constant 24 : index
    %132 = vector.load %arg12[%c0_46, %c24] : memref<8x32xf32, #tpu.memory_space<vmem>>, vector<8x8xf32>
    tpu.vector_store %arg12[%c0_46, %c24], %131 {strides = array<i32>} : memref<8x32xf32, #tpu.memory_space<vmem>>, vector<8x8xf32>,
    %c0_47 = arith.constant 0 : index
    %c0_48 = arith.constant 0 : index
    %133 = vector.load %arg12[%c0_47, %c0_48] : memref<8x32xf32, #tpu.memory_space<vmem>>, vector<8x32xf32>
    %c0_49 = arith.constant 0 : index
    %c0_50 = arith.constant 0 : index
    %c0_51 = arith.constant 0 : index
    %134 = vector.load %arg8[%c0_49, %c0_50, %c0_51] : memref<1x32x32xf32, #tpu.memory_space<vmem>>, vector<1x32x32xf32>
    %135 = vector.shape_cast %134 : vector<1x32x32xf32> to vector<32x32xf32>
    %cst_52 = arith.constant dense<0.000000e+00> : vector<8x32xf32>
    %136 = tpu.matmul %133, %135, %cst_52 {dimension_numbers = #tpu.dot_dimension_numbers<[1], [0], [0], [1], [0, 0, 1, 1], [], []>} : vector<8x32xf32>, vector<32x32xf32>, vector<8x32xf32> -> vector<8x32xf32>
    %137 = arith.addf %6, %136 : vector<8x32xf32>
    %138 = arith.mulf %137, %137 : vector<8x32xf32>
    %cst_53 = arith.constant dense<0.000000e+00> : vector<8xf32>
    %139 = vector.multi_reduction <add>, %138, %cst_53 [1] : vector<8x32xf32> to vector<8xf32>
    %140 = vector.shape_cast %139 : vector<8xf32> to vector<8x1xf32>
    %cst_54 = arith.constant 3.200000e+01 : f32
    %141 = vector.broadcast %cst_54 : f32 to vector<8x1xf32>
    %142 = arith.divf %140, %141 : vector<8x1xf32>
    %cst_55 = arith.constant 9.99999997E-7 : f32
    %143 = vector.broadcast %cst_55 : f32 to vector<8x1xf32>
    %144 = arith.addf %142, %143 : vector<8x1xf32>
    %145 = math.rsqrt %144 : vector<8x1xf32>
    %146 = vector.broadcast %145 : vector<8x1xf32> to vector<8x32xf32>
    %147 = arith.mulf %137, %146 : vector<8x32xf32>
    %148 = vector.broadcast %10 : vector<1x32xf32> to vector<8x32xf32>
    %149 = arith.mulf %147, %148 : vector<8x32xf32>
    %c0_56 = arith.constant 0 : index
    %c0_57 = arith.constant 0 : index
    %c0_58 = arith.constant 0 : index
    %150 = vector.load %arg9[%c0_56, %c0_57, %c0_58] : memref<1x32x128xf32, #tpu.memory_space<vmem>>, vector<1x32x128xf32>
    %151 = vector.shape_cast %150 : vector<1x32x128xf32> to vector<32x128xf32>
    %cst_59 = arith.constant dense<0.000000e+00> : vector<8x128xf32>
    %152 = tpu.matmul %149, %151, %cst_59 {dimension_numbers = #tpu.dot_dimension_numbers<[1], [0], [0], [1], [0, 0, 1, 1], [], []>} : vector<8x32xf32>, vector<32x128xf32>, vector<8x128xf32> -> vector<8x128xf32>
    %153 = vector.extract_strided_slice %152 {offsets = [0, 0], sizes = [8, 64], strides = [1, 1]} : vector<8x128xf32> to vector<8x64xf32>
    %154 = vector.extract_strided_slice %152 {offsets = [0, 64], sizes = [8, 64], strides = [1, 1]} : vector<8x128xf32> to vector<8x64xf32>
    %155 = arith.negf %153 : vector<8x64xf32>
    %156 = math.exp %155 : vector<8x64xf32>
    %cst_60 = arith.constant 1.000000e+00 : f32
    %157 = vector.broadcast %cst_60 : f32 to vector<8x64xf32>
    %158 = arith.addf %157, %156 : vector<8x64xf32>
    %159 = arith.divf %157, %158 : vector<8x64xf32>
    %160 = arith.mulf %153, %159 : vector<8x64xf32>
    %161 = arith.mulf %160, %154 : vector<8x64xf32>
    %c0_61 = arith.constant 0 : index
    %c0_62 = arith.constant 0 : index
    %c0_63 = arith.constant 0 : index
    %162 = vector.load %arg10[%c0_61, %c0_62, %c0_63] : memref<1x64x32xf32, #tpu.memory_space<vmem>>, vector<1x64x32xf32>
    %163 = vector.shape_cast %162 : vector<1x64x32xf32> to vector<64x32xf32>
    %cst_64 = arith.constant dense<0.000000e+00> : vector<8x32xf32>
    %164 = tpu.matmul %161, %163, %cst_64 {dimension_numbers = #tpu.dot_dimension_numbers<[1], [0], [0], [1], [0, 0, 1, 1], [], []>} : vector<8x64xf32>, vector<64x32xf32>, vector<8x32xf32> -> vector<8x32xf32>
    %165 = arith.addf %137, %164 : vector<8x32xf32>
    %c1_i32 = arith.constant 1 : i32
    %166 = arith.cmpi slt, %arg1, %c1_i32 : i32
    %167 = arith.extui %166 : i1 to i32
    %c0_i32_65 = arith.constant 0 : i32
    %168 = arith.cmpi ne, %167, %c0_i32_65 : i32
    scf.if %168 {
      %c0_68 = arith.constant 0 : index
      %c0_69 = arith.constant 0 : index
      %c0_70 = arith.constant 0 : index
      %172 = vector.load %arg11[%c0_68, %c0_69, %c0_70] : memref<1x8x32xf32, #tpu.memory_space<vmem>>, vector<1x8x32xf32>
      %173 = vector.shape_cast %172 : vector<1x8x32xf32> to vector<8x32xf32>
      %174 = vector.shape_cast %165 : vector<8x32xf32> to vector<1x8x32xf32>
      tpu.vector_store %arg11[%c0_68, %c0_69, %c0_70], %174 {strides = array<i32>} : memref<1x8x32xf32, #tpu.memory_space<vmem>>, vector<1x8x32xf32>,
    } else {
    }
    %c1_i32_66 = arith.constant 1 : i32
    %169 = arith.cmpi eq, %arg1, %c1_i32_66 : i32
    %170 = arith.extui %169 : i1 to i32
    %c0_i32_67 = arith.constant 0 : i32
    %171 = arith.cmpi ne, %170, %c0_i32_67 : i32
    scf.if %171 {
      %172 = arith.mulf %165, %165 : vector<8x32xf32>
      %cst_68 = arith.constant dense<0.000000e+00> : vector<8xf32>
      %173 = vector.multi_reduction <add>, %172, %cst_68 [1] : vector<8x32xf32> to vector<8xf32>
      %174 = vector.shape_cast %173 : vector<8xf32> to vector<8x1xf32>
      %cst_69 = arith.constant 3.200000e+01 : f32
      %175 = vector.broadcast %cst_69 : f32 to vector<8x1xf32>
      %176 = arith.divf %174, %175 : vector<8x1xf32>
      %cst_70 = arith.constant 9.99999997E-7 : f32
      %177 = vector.broadcast %cst_70 : f32 to vector<8x1xf32>
      %178 = arith.addf %176, %177 : vector<8x1xf32>
      %179 = math.rsqrt %178 : vector<8x1xf32>
      %180 = vector.broadcast %179 : vector<8x1xf32> to vector<8x32xf32>
      %181 = arith.mulf %165, %180 : vector<8x32xf32>
      %182 = vector.broadcast %11 : vector<1x32xf32> to vector<8x32xf32>
      %183 = arith.mulf %181, %182 : vector<8x32xf32>
      %c0_71 = arith.constant 0 : index
      %c0_72 = arith.constant 0 : index
      %c0_73 = arith.constant 0 : index
      %184 = vector.load %arg11[%c0_71, %c0_72, %c0_73] : memref<1x8x32xf32, #tpu.memory_space<vmem>>, vector<1x8x32xf32>
      %185 = vector.shape_cast %184 : vector<1x8x32xf32> to vector<8x32xf32>
      %186 = vector.shape_cast %183 : vector<8x32xf32> to vector<1x8x32xf32>
      tpu.vector_store %arg11[%c0_71, %c0_72, %c0_73], %186 {strides = array<i32>} : memref<1x8x32xf32, #tpu.memory_space<vmem>>, vector<1x8x32xf32>,
    } else {
    }
    return
  }
  func.func @transform_0(%arg0: i32, %arg1: i32, %arg2: memref<2xi32, #tpu.memory_space<smem>>) -> (i32, i32, i32) {
    %c0_i32 = arith.constant 0 : i32
    %c0_i32_0 = arith.constant 0 : i32
    %c0_i32_1 = arith.constant 0 : i32
    return %arg0, %c0_i32, %c0_i32_0 : i32, i32, i32
  }
  func.func @transform_1(%arg0: i32, %arg1: i32, %arg2: memref<2xi32, #tpu.memory_space<smem>>) -> (i32, i32, i32) {
    %c0_i32 = arith.constant 0 : i32
    %c0_i32_0 = arith.constant 0 : i32
    %c0_i32_1 = arith.constant 0 : i32
    %c0_i32_2 = arith.constant 0 : i32
    return %c0_i32, %c0_i32_0, %c0_i32_1 : i32, i32, i32
  }
  func.func @transform_2(%arg0: i32, %arg1: i32, %arg2: memref<2xi32, #tpu.memory_space<smem>>) -> (i32, i32, i32) {
    %c0_i32 = arith.constant 0 : i32
    %c0_i32_0 = arith.constant 0 : i32
    %c0_i32_1 = arith.constant 0 : i32
    return %arg1, %c0_i32, %c0_i32_0 : i32, i32, i32
  }
  func.func @transform_3(%arg0: i32, %arg1: i32, %arg2: memref<2xi32, #tpu.memory_space<smem>>) -> (i32, i32, i32) {
    %c0_i32 = arith.constant 0 : i32
    %c0_i32_0 = arith.constant 0 : i32
    %c0_i32_1 = arith.constant 0 : i32
    return %arg1, %c0_i32, %c0_i32_0 : i32, i32, i32
  }
  func.func @transform_4(%arg0: i32, %arg1: i32, %arg2: memref<2xi32, #tpu.memory_space<smem>>) -> (i32, i32, i32) {
    %c0_i32 = arith.constant 0 : i32
    %c0_i32_0 = arith.constant 0 : i32
    %c0_i32_1 = arith.constant 0 : i32
    return %arg1, %c0_i32, %c0_i32_0 : i32, i32, i32
  }
  func.func @transform_5(%arg0: i32, %arg1: i32, %arg2: memref<2xi32, #tpu.memory_space<smem>>) -> (i32, i32, i32) {
    %c0_i32 = arith.constant 0 : i32
    %c0_i32_0 = arith.constant 0 : i32
    %c0_i32_1 = arith.constant 0 : i32
    return %arg1, %c0_i32, %c0_i32_0 : i32, i32, i32
  }
  func.func @transform_6(%arg0: i32, %arg1: i32, %arg2: memref<2xi32, #tpu.memory_space<smem>>) -> (i32, i32, i32) {
    %c0_i32 = arith.constant 0 : i32
    %c0_i32_0 = arith.constant 0 : i32
    %c0_i32_1 = arith.constant 0 : i32
    return %arg1, %c0_i32, %c0_i32_0 : i32, i32, i32
  }
  func.func @transform_7(%arg0: i32, %arg1: i32, %arg2: memref<2xi32, #tpu.memory_space<smem>>) -> (i32, i32, i32) {
    %c0_i32 = arith.constant 0 : i32
    %c0_i32_0 = arith.constant 0 : i32
    %c0_i32_1 = arith.constant 0 : i32
    return %arg1, %c0_i32, %c0_i32_0 : i32, i32, i32
  }
  func.func @transform_8(%arg0: i32, %arg1: i32, %arg2: memref<2xi32, #tpu.memory_space<smem>>) -> (i32, i32, i32) {
    %c0_i32 = arith.constant 0 : i32
    %c0_i32_0 = arith.constant 0 : i32
    %c0_i32_1 = arith.constant 0 : i32
    return %arg0, %c0_i32, %c0_i32_0 : i32, i32, i32
  }
}

</mosaic_0001>

<llo_original>
// kernel: qwen2_encoder_forward.1
$region0: #{qwen2_encoder_forward.1}
  #allocation0 [shape = 'u32[]', space=smem, size = 0x4, offset = 0x4, fixed_abs, tag = 'smem constant byte address 0x4 - core index']
  #allocation1 [shape = 'u32[144,128]{1,0:T(1,128)}', space=vmem, size = 0x12000, scoped, tag = 'internal scratch']
  #allocation2 [shape = 'f32[8,32]{1,0:T(8,128)}', space=vmem, size = 0x1000, scoped, tag = 'scratch operand']
  #allocation3 [shape = 's32[1]{0}', space=sflag, size = 0x4, scoped, tag = 'scoped memory for qwen2_encoder_forward.1']
  #allocation4 [shape = 'u8[512]{0}', space=smem, size = 0x200, scoped, tag = 'prefetched SMEM operand 0']
  %s0 = inlined_call_operand.vmem [shape: s32[2], index: 0, kind: input, shape index: {}]
  %s1 = inlined_call_operand.vmem [shape: f32[2,8,32], index: 1, kind: input, shape index: {}]
  %s2 = inlined_call_operand.vmem [shape: f32[2,8,32], index: 2, kind: input, shape index: {}]
  %s3 = inlined_call_operand.vmem [shape: f32[2,3,32], index: 3, kind: input, shape index: {}]
  %s4 = inlined_call_operand.vmem [shape: f32[2,32,112], index: 4, kind: input, shape index: {}]
  %s5 = inlined_call_operand.vmem [shape: f32[2,1,112], index: 5, kind: input, shape index: {}]
  %s6 = inlined_call_operand.hbm [shape: f32[2,32,32], index: 6, kind: input, shape index: {}]
  %s7 = inlined_call_operand.hbm [shape: f32[2,32,128], index: 7, kind: input, shape index: {}]
  %s8 = inlined_call_operand.vmem [shape: f32[2,64,32], index: 8, kind: input, shape index: {}]
  %s9 = inlined_call_operand.hbm [shape: f32[2,8,32], index: 9, kind: output, shape index: {}]
  %s10 = sld [smem:[#allocation0]]
  $region85: #{qwen2_encoder_forward.1} parent=0
    _
  %s12 = ssub.s32 1, %s10
  %s13 = scalar_select 0, %s12, %s10
  %s14 = sshll.u32 %s0, 4
  %s15 = int_to_ptr.vmem [resolvable:$true] %s14
  %17 = dma.vmem_to_smem %s15, 16, [#allocation4], [#allocation3]
  %18 = dma.done [#allocation3], 16
  %19 = sfence
  $region1: #{qwen2_encoder_forward.1} parent=0
    #allocation5 [shape = 'u8[32768]{0}', space=vmem, size = 0x8000, scoped, tag = 'input window, operand 6']
    #allocation6 [shape = 's32[2]{0}', space=sflag, size = 0x8, scoped, tag = 'scoped memory for qwen2_encoder_forward.1']
    #allocation7 [shape = 's32[2]{0}', space=sflag, size = 0x8, scoped, tag = 'scoped memory for qwen2_encoder_forward.1']
    #allocation8 [shape = 'u8[32768]{0}', space=vmem, size = 0x8000, scoped, tag = 'input window, operand 7']
    #allocation9 [shape = 's32[2]{0}', space=sflag, size = 0x8, scoped, tag = 'scoped memory for qwen2_encoder_forward.1']
    #allocation10 [shape = 'u8[8192]{0}', space=vmem, size = 0x2000, scoped, tag = 'output window, operand 0']
    %20 = vsyncpa [#allocation6], 0
    %s21 = scalar_lea.sflag [#allocation6], 1
    %22 = vsyncpa %s21, 0
    %23 = vsyncpa [#allocation9], 0
    %s24 = scalar_lea.sflag [#allocation9], 1
    %25 = vsyncpa %s24, 0
    %26 = vsyncpa [#allocation7], 0
    %s27 = scalar_lea.sflag [#allocation7], 1
    %28 = vsyncpa %s27, 0
    loop: start=0, step=1, limit=6
    $region2: #{qwen2_encoder_forward.1} parent=1 // loop_pre_header
      _
    $region3: #{qwen2_encoder_forward.1} parent=1 // loop_header
      %s30 = sphi 0, %s34
      %p31 = scmp.ge.s32.totalorder %s30, 6
      %s37 = sphi 0, %s49
      %s38 = sphi 0, %s45
      %s39 = sphi 0, %s37
      %s40 = sphi 0, %s38
      %s41 = sphi 0, %s39
      %s42 = sphi 0, %s40
      %s52 = sphi 0, %s54
      %s55 = sphi 0, %s52
      %s56 = sphi 0, %s55
      %s72 = sphi 0, %s56
      %s76 = sphi 0, %s76
      %s78 = sphi 0, %s76
      %s79 = sphi 0, %s78
      %s93 = sphi 0, %s79
      %s99 = sphi 0, %s101
      %s102 = sphi 0, %s99
      %s103 = sphi 0, %s102
      %s119 = sphi 0, %s103
      %s125 = sphi 0, %s127
      %s128 = sphi 0, %s125
      %s129 = sphi 0, %s128
      %s145 = sphi 0, %s129
      %s151 = sphi 0, %s153
      %s154 = sphi 0, %s151
      %s155 = sphi 0, %s154
      %s171 = sphi 0, %s155
      %s177 = sphi 0, %s179
      %s180 = sphi 0, %s177
      %s181 = sphi 0, %s180
      %s197 = sphi 0, %s181
      %s203 = sphi 0, %s205
      %s206 = sphi 0, %s203
      %s207 = sphi 0, %s206
      %s223 = sphi 0, %s207
      %s229 = sphi 0, %s231
      %s232 = sphi 0, %s229
      %s233 = sphi 0, %s232
      %s249 = sphi 0, %s233
      %s255 = sphi 0, %s257
      %s258 = sphi 0, %s255
      %s259 = sphi 0, %s258
      %s275 = sphi 0, %s259
    $region4: #{qwen2_encoder_forward.1} parent=1 // loop_header_branch
      %33 = sbr.rel (%p31) target = $region8
    $region5: #{qwen2_encoder_forward.1} parent=1 // loop_body
      %s35 = ssub.s32 %s30, 1
      %s36 = ssub.s32 %s30, 2
      %s43 = sadd.s32 1, %s38
      %p44 = scmp.ge.s32.totalorder %s43, 2
      %s45 = scalar_select %p44, 0, %s43
      %s46 = sadd.s32 1, %s37
      %s47 = scalar_select %p44, %s46, %s37
      %p48 = scmp.ge.s32.totalorder %s47, 2
      %s49 = scalar_select %p48, 0, %s47
      %s50 = ssub.s32 %s37, %s49
      %p51 = scmp.eq.s32.totalorder %s50, 0
      %s53 = sadd.s32 %s52, 1
      %s54 = scalar_select %p51, %s52, %s53
      %p57 = pneg %p51
      %p58 = scmp.eq.s32.totalorder %s30, 3
      %p59 = por %p57, %p58
      %p60 = scmp.ne.s32.totalorder %s52, %s55
      %p61 = scmp.eq.s32.totalorder %s30, 0
      %p62 = por %p60, %p61
      %p63 = scmp.ne.s32.totalorder %s52, %s55
      %p64 = scmp.eq.s32.totalorder %s35, 3
      %p65 = por %p63, %p64
      %p66 = scmp.ne.s32.totalorder %s55, %s56
      %p67 = scmp.eq.s32.totalorder %s35, 0
      %p68 = por %p66, %p67
      %p69 = scmp.ne.s32.totalorder %s55, %s56
      %p70 = scmp.eq.s32.totalorder %s36, 3
      %p71 = por %p69, %p70
      %p73 = scmp.ne.s32.totalorder %s56, %s72
      %p74 = scmp.eq.s32.totalorder %s36, 0
      %p75 = por %p73, %p74
      %s77 = sadd.s32 %s76, 1
      %p80 = scmp.eq.s32.totalorder %s30, 3
      %p81 = scmp.ne.s32.totalorder %s76, %s78
      %p82 = scmp.eq.s32.totalorder %s30, 0
      %p83 = por %p81, %p82
      %p84 = scmp.ne.s32.totalorder %s76, %s78
      %p85 = scmp.eq.s32.totalorder %s35, 3
      %p86 = por %p84, %p85
      %p87 = scmp.ne.s32.totalorder %s78, %s79
      %p88 = scmp.eq.s32.totalorder %s35, 0
      %p89 = por %p87, %p88
      %p90 = scmp.ne.s32.totalorder %s78, %s79
      %p91 = scmp.eq.s32.totalorder %s36, 3
      %p92 = por %p90, %p91
      %p94 = scmp.ne.s32.totalorder %s79, %s93
      %p95 = scmp.eq.s32.totalorder %s36, 0
      %p96 = por %p94, %p95
      %s97 = ssub.s32 %s38, %s45
      %p98 = scmp.eq.s32.totalorder %s97, 0
      %s100 = sadd.s32 %s99, 1
      %s101 = scalar_select %p98, %s99, %s100
      %p104 = pneg %p98
      %p105 = scmp.eq.s32.totalorder %s30, 3
      %p106 = por %p104, %p105
      %p107 = scmp.ne.s32.totalorder %s99, %s102
      %p108 = scmp.eq.s32.totalorder %s30, 0
      %p109 = por %p107, %p108
      %p110 = scmp.ne.s32.totalorder %s99, %s102
      %p111 = scmp.eq.s32.totalorder %s35, 3
      %p112 = por %p110, %p111
      %p113 = scmp.ne.s32.totalorder %s102, %s103
      %p114 = scmp.eq.s32.totalorder %s35, 0
      %p115 = por %p113, %p114
      %p116 = scmp.ne.s32.totalorder %s102, %s103
      %p117 = scmp.eq.s32.totalorder %s36, 3
      %p118 = por %p116, %p117
      %p120 = scmp.ne.s32.totalorder %s103, %s119
      %p121 = scmp.eq.s32.totalorder %s36, 0
      %p122 = por %p120, %p121
      %s123 = ssub.s32 %s38, %s45
      %p124 = scmp.eq.s32.totalorder %s123, 0
      %s126 = sadd.s32 %s125, 1
      %s127 = scalar_select %p124, %s125, %s126
      %p130 = pneg %p124
      %p131 = scmp.eq.s32.totalorder %s30, 3
      %p132 = por %p130, %p131
      %p133 = scmp.ne.s32.totalorder %s125, %s128
      %p134 = scmp.eq.s32.totalorder %s30, 0
      %p135 = por %p133, %p134
      %p136 = scmp.ne.s32.totalorder %s125, %s128
      %p137 = scmp.eq.s32.totalorder %s35, 3
      %p138 = por %p136, %p137
      %p139 = scmp.ne.s32.totalorder %s128, %s129
      %p140 = scmp.eq.s32.totalorder %s35, 0
      %p141 = por %p139, %p140
      %p142 = scmp.ne.s32.totalorder %s128, %s129
      %p143 = scmp.eq.s32.totalorder %s36, 3
      %p144 = por %p142, %p143
      %p146 = scmp.ne.s32.totalorder %s129, %s145
      %p147 = scmp.eq.s32.totalorder %s36, 0
      %p148 = por %p146, %p147
      %s149 = ssub.s32 %s38, %s45
      %p150 = scmp.eq.s32.totalorder %s149, 0
      %s152 = sadd.s32 %s151, 1
      %s153 = scalar_select %p150, %s151, %s152
      %p156 = pneg %p150
      %p157 = scmp.eq.s32.totalorder %s30, 3
      %p158 = por %p156, %p157
      %p159 = scmp.ne.s32.totalorder %s151, %s154
      %p160 = scmp.eq.s32.totalorder %s30, 0
      %p161 = por %p159, %p160
      %p162 = scmp.ne.s32.totalorder %s151, %s154
      %p163 = scmp.eq.s32.totalorder %s35, 3
      %p164 = por %p162, %p163
      %p165 = scmp.ne.s32.totalorder %s154, %s155
      %p166 = scmp.eq.s32.totalorder %s35, 0
      %p167 = por %p165, %p166
      %p168 = scmp.ne.s32.totalorder %s154, %s155
      %p169 = scmp.eq.s32.totalorder %s36, 3
      %p170 = por %p168, %p169
      %p172 = scmp.ne.s32.totalorder %s155, %s171
      %p173 = scmp.eq.s32.totalorder %s36, 0
      %p174 = por %p172, %p173
      %s175 = ssub.s32 %s38, %s45
      %p176 = scmp.eq.s32.totalorder %s175, 0
      %s178 = sadd.s32 %s177, 1
      %s179 = scalar_select %p176, %s177, %s178
      %p182 = pneg %p176
      %p183 = scmp.eq.s32.totalorder %s30, 3
      %p184 = por %p182, %p183
      %p185 = scmp.ne.s32.totalorder %s177, %s180
      %p186 = scmp.eq.s32.totalorder %s30, 0
      %p187 = por %p185, %p186
      %p188 = scmp.ne.s32.totalorder %s177, %s180
      %p189 = scmp.eq.s32.totalorder %s35, 3
      %p190 = por %p188, %p189
      %p191 = scmp.ne.s32.totalorder %s180, %s181
      %p192 = scmp.eq.s32.totalorder %s35, 0
      %p193 = por %p191, %p192
      %p194 = scmp.ne.s32.totalorder %s180, %s181
      %p195 = scmp.eq.s32.totalorder %s36, 3
      %p196 = por %p194, %p195
      %p198 = scmp.ne.s32.totalorder %s181, %s197
      %p199 = scmp.eq.s32.totalorder %s36, 0
      %p200 = por %p198, %p199
      %s201 = ssub.s32 %s38, %s45
      %p202 = scmp.eq.s32.totalorder %s201, 0
      %s204 = sadd.s32 %s203, 1
      %s205 = scalar_select %p202, %s203, %s204
      %p208 = pneg %p202
      %p209 = scmp.eq.s32.totalorder %s30, 3
      %p210 = por %p208, %p209
      %p211 = scmp.ne.s32.totalorder %s203, %s206
      %p212 = scmp.eq.s32.totalorder %s30, 0
      %p213 = por %p211, %p212
      %p214 = scmp.ne.s32.totalorder %s203, %s206
      %p215 = scmp.eq.s32.totalorder %s35, 3
      %p216 = por %p214, %p215
      %p217 = scmp.ne.s32.totalorder %s206, %s207
      %p218 = scmp.eq.s32.totalorder %s35, 0
      %p219 = por %p217, %p218
      %p220 = scmp.ne.s32.totalorder %s206, %s207
      %p221 = scmp.eq.s32.totalorder %s36, 3
      %p222 = por %p220, %p221
      %p224 = scmp.ne.s32.totalorder %s207, %s223
      %p225 = scmp.eq.s32.totalorder %s36, 0
      %p226 = por %p224, %p225
      %s227 = ssub.s32 %s38, %s45
      %p228 = scmp.eq.s32.totalorder %s227, 0
      %s230 = sadd.s32 %s229, 1
      %s231 = scalar_select %p228, %s229, %s230
      %p234 = pneg %p228
      %p235 = scmp.eq.s32.totalorder %s30, 3
      %p236 = por %p234, %p235
      %p237 = scmp.ne.s32.totalorder %s229, %s232
      %p238 = scmp.eq.s32.totalorder %s30, 0
      %p239 = por %p237, %p238
      %p240 = scmp.ne.s32.totalorder %s229, %s232
      %p241 = scmp.eq.s32.totalorder %s35, 3
      %p242 = por %p240, %p241
      %p243 = scmp.ne.s32.totalorder %s232, %s233
      %p244 = scmp.eq.s32.totalorder %s35, 0
      %p245 = por %p243, %p244
      %p246 = scmp.ne.s32.totalorder %s232, %s233
      %p247 = scmp.eq.s32.totalorder %s36, 3
      %p248 = por %p246, %p247
      %p250 = scmp.ne.s32.totalorder %s233, %s249
      %p251 = scmp.eq.s32.totalorder %s36, 0
      %p252 = por %p250, %p251
      %s253 = ssub.s32 %s37, %s49
      %p254 = scmp.eq.s32.totalorder %s253, 0
      %s256 = sadd.s32 %s255, 1
      %s257 = scalar_select %p254, %s255, %s256
      %p260 = pneg %p254
      %p261 = scmp.eq.s32.totalorder %s30, 3
      %p262 = por %p260, %p261
      %p263 = scmp.ne.s32.totalorder %s255, %s258
      %p264 = scmp.eq.s32.totalorder %s30, 0
      %p265 = por %p263, %p264
      %p266 = scmp.ne.s32.totalorder %s255, %s258
      %p267 = scmp.eq.s32.totalorder %s35, 3
      %p268 = por %p266, %p267
      %p269 = scmp.ne.s32.totalorder %s258, %s259
      %p270 = scmp.eq.s32.totalorder %s35, 0
      %p271 = por %p269, %p270
      %p272 = scmp.ne.s32.totalorder %s258, %s259
      %p273 = scmp.eq.s32.totalorder %s36, 3
      %p274 = por %p272, %p273
      %p276 = scmp.ne.s32.totalorder %s259, %s275
      %p277 = scmp.eq.s32.totalorder %s36, 0
      %p278 = por %p276, %p277
      %p279 = scmp.le.s32.totalorder 1, %s30
      %p280 = scmp.lt.s32.totalorder %s30, 5
      %p281 = pnand %p279, %p280
      %p282 = pneg %p281
      // Predicated region
      $region9: #{qwen2_encoder_forward.1} parent=5 // pred_check
        _
      $region10: #{qwen2_encoder_forward.1} parent=5 // pred_check_branch
        %284 = sbr.rel (%p281) target = $region12
      $region11: #{qwen2_encoder_forward.1} parent=5 // pred_region
        %s285 = ssub.s32 %s30, 1
        // Predicated region
        $region13: #{qwen2_encoder_forward.1} parent=11 // pred_check
          %p286 = pneg %p89
        $region14: #{qwen2_encoder_forward.1} parent=11 // pred_check_branch
          %288 = sbr.rel (%p286) target = $region16
        $region15: #{qwen2_encoder_forward.1} parent=11 // pred_region
          _
        $region16: #{qwen2_encoder_forward.1} parent=11 // pred_fallthru
          _
      $region12: #{qwen2_encoder_forward.1} parent=5 // pred_fallthru
        _
      %p289 = scmp.lt.s32.totalorder %s30, 4
      // Predicated region
      $region17: #{qwen2_encoder_forward.1} parent=5 // pred_check
        %p290 = pneg %p289
      $region18: #{qwen2_encoder_forward.1} parent=5 // pred_check_branch
        %292 = sbr.rel (%p290) target = $region20
      $region19: #{qwen2_encoder_forward.1} parent=5 // pred_region
        // Predicated region
        $region21: #{qwen2_encoder_forward.1} parent=19 // pred_check
          %p293 = pneg %p62
        $region22: #{qwen2_encoder_forward.1} parent=19 // pred_check_branch
          %295 = sbr.rel (%p293) target = $region24
        $region23: #{qwen2_encoder_forward.1} parent=19 // pred_region
          %p296 = scmp.lt.s32.totalorder %s37, 1
          %s297 = scalar_select %p296, %s37, 1
          %s298 = smul.addr %s297, 8
          %s299 = scalar_lea.vmem %s1, %s298
        $region24: #{qwen2_encoder_forward.1} parent=19 // pred_fallthru
          _
        // Predicated region
        $region25: #{qwen2_encoder_forward.1} parent=19 // pred_check
          %p300 = pneg %p109
        $region26: #{qwen2_encoder_forward.1} parent=19 // pred_check_branch
          %302 = sbr.rel (%p300) target = $region28
        $region27: #{qwen2_encoder_forward.1} parent=19 // pred_region
          %p303 = scmp.lt.s32.totalorder %s38, 1
          %s304 = scalar_select %p303, %s38, 1
          %s305 = smul.addr %s304, 4
          %s306 = scalar_lea.vmem %s3, %s305
        $region28: #{qwen2_encoder_forward.1} parent=19 // pred_fallthru
          _
        // Predicated region
        $region29: #{qwen2_encoder_forward.1} parent=19 // pred_check
          %p307 = pneg %p135
        $region30: #{qwen2_encoder_forward.1} parent=19 // pred_check_branch
          %309 = sbr.rel (%p307) target = $region32
        $region31: #{qwen2_encoder_forward.1} parent=19 // pred_region
          %p310 = scmp.lt.s32.totalorder %s38, 1
          %s311 = scalar_select %p310, %s38, 1
          %s312 = smul.addr %s311, 4
          %s313 = smul.addr %s312, 8
          %s314 = scalar_lea.vmem %s4, %s313
        $region32: #{qwen2_encoder_forward.1} parent=19 // pred_fallthru
          _
        // Predicated region
        $region33: #{qwen2_encoder_forward.1} parent=19 // pred_check
          %p315 = pneg %p161
        $region34: #{qwen2_encoder_forward.1} parent=19 // pred_check_branch
          %317 = sbr.rel (%p315) target = $region36
        $region35: #{qwen2_encoder_forward.1} parent=19 // pred_region
          %p318 = scmp.lt.s32.totalorder %s38, 1
          %s319 = scalar_select %p318, %s38, 1
          %s320 = scalar_lea.vmem %s5, %s319
        $region36: #{qwen2_encoder_forward.1} parent=19 // pred_fallthru
          _
        // Predicated region
        $region37: #{qwen2_encoder_forward.1} parent=19 // pred_check
          %p321 = pneg %p187
        $region38: #{qwen2_encoder_forward.1} parent=19 // pred_check_branch
          %323 = sbr.rel (%p321) target = $region40
        $region39: #{qwen2_encoder_forward.1} parent=19 // pred_region
          %s324 = sand.u32 %s177, 1
          %s325 = scalar_lea.sflag [#allocation6], %s324
          %s326 = sand.u32 %s177, 1
          %s327 = smul.addr %s326, 32
          %s328 = scalar_lea.vmem [#allocation5], %s327
          %s330 = ssub.s32 512, 512
          %331 = vsyncadd %s325, %s330
          %s332 = smul.addr %s38, 4
          %s333 = smul.addr %s332, 128
          %s334 = scalar_lea.hbm %s6, %s333
          %s335 = sshll.u32 %s328, 4
          %s336 = int_to_ptr.vmem [resolvable:$true] %s335
          %341 = dma.hbm_to_vmem [thread:$0]  %s334, 512, %s336, %s325, 128, 128, 8
        $region40: #{qwen2_encoder_forward.1} parent=19 // pred_fallthru
          _
        // Predicated region
        $region41: #{qwen2_encoder_forward.1} parent=19 // pred_check
          %p342 = pneg %p213
        $region42: #{qwen2_encoder_forward.1} parent=19 // pred_check_branch
          %344 = sbr.rel (%p342) target = $region44
        $region43: #{qwen2_encoder_forward.1} parent=19 // pred_region
          %s345 = sand.u32 %s203, 1
          %s346 = scalar_lea.sflag [#allocation9], %s345
          %s347 = sand.u32 %s203, 1
          %s348 = smul.addr %s347, 32
          %s349 = scalar_lea.vmem [#allocation8], %s348
          %s351 = ssub.s32 512, 512
          %352 = vsyncadd %s346, %s351
          %s353 = smul.addr %s38, 4
          %s354 = smul.addr %s353, 128
          %s355 = scalar_lea.hbm %s7, %s354
          %s356 = sshll.u32 %s349, 4
          %s357 = int_to_ptr.vmem [resolvable:$true] %s356
          %362 = dma.hbm_to_vmem [thread:$0]  %s355, 512, %s357, %s346, 128, 128, 8
        $region44: #{qwen2_encoder_forward.1} parent=19 // pred_fallthru
          _
        // Predicated region
        $region45: #{qwen2_encoder_forward.1} parent=19 // pred_check
          %p363 = pneg %p239
        $region46: #{qwen2_encoder_forward.1} parent=19 // pred_check_branch
          %365 = sbr.rel (%p363) target = $region48
        $region47: #{qwen2_encoder_forward.1} parent=19 // pred_region
          %p366 = scmp.lt.s32.totalorder %s38, 1
          %s367 = scalar_select %p366, %s38, 1
          %s368 = smul.addr %s367, 8
          %s369 = smul.addr %s368, 8
          %s370 = scalar_lea.vmem %s8, %s369
        $region48: #{qwen2_encoder_forward.1} parent=19 // pred_fallthru
          _
      $region20: #{qwen2_encoder_forward.1} parent=5 // pred_fallthru
        _
      %p371 = scmp.le.s32.totalorder 1, %s30
      %p372 = scmp.lt.s32.totalorder %s30, 5
      %p373 = pnand %p371, %p372
      %p374 = pneg %p373
      // Predicated region
      $region49: #{qwen2_encoder_forward.1} parent=5 // pred_check
        _
      $region50: #{qwen2_encoder_forward.1} parent=5 // pred_check_branch
        %376 = sbr.rel (%p373) target = $region52
      $region51: #{qwen2_encoder_forward.1} parent=5 // pred_region
        %s377 = ssub.s32 %s30, 1
        %s378 = sand.u32 %s180, 1
        %s379 = scalar_lea.sflag [#allocation6], %s378
        %s380 = sand.u32 %s180, 1
        %s381 = smul.addr %s380, 32
        %s382 = scalar_lea.vmem [#allocation5], %s381
        // Predicated region
        $region53: #{qwen2_encoder_forward.1} parent=51 // pred_check
          %p383 = pneg %p193
        $region54: #{qwen2_encoder_forward.1} parent=51 // pred_check_branch
          %385 = sbr.rel (%p383) target = $region56
        $region55: #{qwen2_encoder_forward.1} parent=51 // pred_region
          %386 = dma.done %s379, 512
        $region56: #{qwen2_encoder_forward.1} parent=51 // pred_fallthru
          _
        %s387 = sand.u32 %s206, 1
        %s388 = scalar_lea.sflag [#allocation9], %s387
        %s389 = sand.u32 %s206, 1
        %s390 = smul.addr %s389, 32
        %s391 = scalar_lea.vmem [#allocation8], %s390
        // Predicated region
        $region57: #{qwen2_encoder_forward.1} parent=51 // pred_check
          %p392 = pneg %p219
        $region58: #{qwen2_encoder_forward.1} parent=51 // pred_check_branch
          %394 = sbr.rel (%p392) target = $region60
        $region59: #{qwen2_encoder_forward.1} parent=51 // pred_region
          %395 = dma.done %s388, 512
        $region60: #{qwen2_encoder_forward.1} parent=51 // pred_fallthru
          _
        %p396 = scmp.lt.s32.totalorder %s39, 1
        %s397 = scalar_select %p396, %s39, 1
        %s398 = smul.addr %s397, 8
        %s399 = scalar_lea.vmem %s1, %s398
        %p400 = pneg %p68
        %p401 = pneg %p65
        %p402 = pneg %p89
        %p403 = pneg %p86
        %p404 = scmp.lt.s32.totalorder %s40, 1
        %s405 = scalar_select %p404, %s40, 1
        %s406 = smul.addr %s405, 4
        %s407 = scalar_lea.vmem %s3, %s406
        %p408 = pneg %p115
        %p409 = pneg %p112
        %p410 = scmp.lt.s32.totalorder %s40, 1
        %s411 = scalar_select %p410, %s40, 1
        %s412 = smul.addr %s411, 4
        %s413 = smul.addr %s412, 8
        %s414 = scalar_lea.vmem %s4, %s413
        %p415 = pneg %p141
        %p416 = pneg %p138
        %p417 = scmp.lt.s32.totalorder %s40, 1
        %s418 = scalar_select %p417, %s40, 1
        %s419 = scalar_lea.vmem %s5, %s418
        %p420 = pneg %p167
        %p421 = pneg %p164
        %s422 = sand.u32 %s180, 1
        %s423 = scalar_lea.sflag [#allocation6], %s422
        %s424 = sand.u32 %s180, 1
        %s425 = smul.addr %s424, 32
        %s426 = scalar_lea.vmem [#allocation5], %s425
        %p427 = pneg %p193
        %p428 = pneg %p190
        %s429 = sand.u32 %s206, 1
        %s430 = scalar_lea.sflag [#allocation9], %s429
        %s431 = sand.u32 %s206, 1
        %s432 = smul.addr %s431, 32
        %s433 = scalar_lea.vmem [#allocation8], %s432
        %p434 = pneg %p219
        %p435 = pneg %p216
        %p436 = scmp.lt.s32.totalorder %s40, 1
        %s437 = scalar_select %p436, %s40, 1
        %s438 = smul.addr %s437, 8
        %s439 = smul.addr %s438, 8
        %s440 = scalar_lea.vmem %s8, %s439
        %p441 = pneg %p245
        %p442 = pneg %p242
        %p443 = pneg %p271
        %p444 = pneg %p268
        %s445 = sand.u32 %s258, 1
        %s446 = scalar_lea.sflag [#allocation7], %s445
        %s447 = sand.u32 %s258, 1
        %s448 = smul.addr %s447, 8
        %s449 = scalar_lea.vmem [#allocation10], %s448
        %p450 = scmp.lt.s32.totalorder %s39, 1
        %s451 = scalar_select %p450, %s39, 1
        %s452 = smul.addr %s451, 8
        %s453 = scalar_lea.vmem %s1, %s452
        %p454 = scmp.lt.s32.totalorder %s40, 1
        %s455 = scalar_select %p454, %s40, 1
        %s456 = smul.addr %s455, 4
        %s457 = scalar_lea.vmem %s3, %s456
        %p458 = scmp.lt.s32.totalorder %s40, 1
        %s459 = scalar_select %p458, %s40, 1
        %s460 = smul.addr %s459, 4
        %s461 = smul.addr %s460, 8
        %s462 = scalar_lea.vmem %s4, %s461
        %p463 = scmp.lt.s32.totalorder %s40, 1
        %s464 = scalar_select %p463, %s40, 1
        %s465 = scalar_lea.vmem %s5, %s464
        %p466 = scmp.lt.s32.totalorder %s40, 1
        %s467 = scalar_select %p466, %s40, 1
        %s468 = smul.addr %s467, 8
        %s469 = smul.addr %s468, 8
        %s470 = scalar_lea.vmem %s8, %s469
        %s471 = sld [smem:[#allocation4 + %s39]]
        %p472 = scmp.eq.s32.totalorder %s40, 0
        // Predicated region
        $region61: #{qwen2_encoder_forward.1} parent=51 // pred_check
          %p473 = pneg %p472
        $region62: #{qwen2_encoder_forward.1} parent=51 // pred_check_branch
          %475 = sbr.rel (%p473) target = $region64
        $region63: #{qwen2_encoder_forward.1} parent=51 // pred_region
          %v476 = vld [vmem:[%s453] sm:$0xff]
          %vm477 = vcmask 261120
          %478 = vst.msk [vmem:[%s449] sm:$0xff] %vm477, %v476
        $region64: #{qwen2_encoder_forward.1} parent=51 // pred_fallthru
          _
        %v479 = vld [vmem:[%s449] sm:$0xff]
        %v480 = vld [vmem:[%s457] sm:$0x7]
        %v481 = vld [vmem:[%s2] sm:$0xff]
        %s482 = scalar_lea.vmem %s2, 8
        %v483 = vld [vmem:[%s482] sm:$0xff]
        %v484 = vmul.f32 %v479, %v479
        %vm485 = vcmask 261120
        %v486 = vsel %vm485, %v484, 0.0
        %487 = vadd.xlane.f32.xlu0 %v486
        %v488 = vpop.xlane.xlu0 %487
        %v489 = vrcp.pop 32.0
        %v490 = vmul.f32 %v488, %v489
        %v491 = vadd.f32 %v490, 1e-06
        %v492 = vrsqrt.pop %v491
        %v493 = vmul.f32 %v479, %v492
        %v494 = vlaneseq
        %v495 = vshrl.u32 %v494, 7
        %v496 = vsub.s32 0, %v495
        %v497 = vrot.slane %v480, %v496
        %v498 = vmul.f32 %v493, %v497
        %v499 = vld [vmem:[%s462] sm:$0xff]
        %v500 = vld [vmem:[%s462 + $0x8] sm:$0xff]
        %v501 = vld [vmem:[%s462 + $0x10] sm:$0xff]
        %v502 = vld [vmem:[%s462 + $0x18] sm:$0xff]
        %v503 = vld [vmem:[%s465] sm:$0x1]
        %v505 = vlaneseq
        %v506 = vshrl.u32 %v505, 7
        %v507 = vsub.s32 0, %v506
        %v508 = vrot.slane %v503, %v507
        %v511 = vsel %vm485, %v498, 0
        %513 = vmatprep.subr.mxu0 0.0
        %514 = vmatpush1.msra.mxu0 0.0
        %515 = vmatprep.subr.mxu0 0.0
        %516 = vmatpush1.msra.mxu0 0.0
        %517 = vmatprep.subr.mxu0 0.0
        %518 = vmatpush1.msra.mxu0 0.0
        %519 = vmatprep.subr.mxu0 0.0
        %520 = vmatpush1.msra.mxu0 0.0
        %521 = vmatprep.subr.mxu0 0.0
        %522 = vmatpush1.msra.mxu0 0.0
        %523 = vmatprep.subr.mxu0 0.0
        %524 = vmatpush1.msra.mxu0 0.0
        %525 = vmatprep.subr.mxu0 0.0
        %526 = vmatpush1.msra.mxu0 0.0
        %527 = vmatprep.subr.mxu0 0.0
        %528 = vmatpush1.msra.mxu0 0.0
        %529 = vmatprep.subr.mxu0 0.0
        %530 = vmatpush1.msra.mxu0 0.0
        %531 = vmatprep.subr.mxu0 0.0
        %532 = vmatpush1.msra.mxu0 0.0
        %533 = vmatprep.subr.mxu0 0.0
        %534 = vmatpush1.msra.mxu0 0.0
        %535 = vmatprep.subr.mxu0 0.0
        %536 = vmatpush1.msra.mxu0 0.0
        %537 = vmatprep.subr.mxu0 0.0
        %538 = vmatpush1.msra.mxu0 %v502
        %539 = vmatprep.subr.mxu0 0.0
        %540 = vmatpush1.msra.mxu0 %v501
        %541 = vmatprep.subr.mxu0 0.0
        %542 = vmatpush1.msra.mxu0 %v500
        %543 = vmatprep.subr.mxu0 0.0
        %544 = vmatpush1.msra.mxu0 %v499
        %545 = vmatprep.subr.mxu0 0.0
        %546 = vmatpush2.msra.mxu0 0.0
        %547 = vmatprep.subr.mxu0 0.0
        %548 = vmatpush2.msra.mxu0 0.0
        %549 = vmatprep.subr.mxu0 0.0
        %550 = vmatpush2.msra.mxu0 0.0
        %551 = vmatprep.subr.mxu0 0.0
        %552 = vmatpush2.msra.mxu0 0.0
        %553 = vmatprep.subr.mxu0 0.0
        %554 = vmatpush2.msra.mxu0 0.0
        %555 = vmatprep.subr.mxu0 0.0
        %556 = vmatpush2.msra.mxu0 0.0
        %557 = vmatprep.subr.mxu0 0.0
        %558 = vmatpush2.msra.mxu0 0.0
        %559 = vmatprep.subr.mxu0 0.0
        %560 = vmatpush2.msra.mxu0 0.0
        %561 = vmatprep.subr.mxu0 0.0
        %562 = vmatpush2.msra.mxu0 0.0
        %563 = vmatprep.subr.mxu0 0.0
        %564 = vmatpush2.msra.mxu0 0.0
        %565 = vmatprep.subr.mxu0 0.0
        %566 = vmatpush2.msra.mxu0 0.0
        %567 = vmatprep.subr.mxu0 0.0
        %568 = vmatpush2.msra.mxu0 0.0
        %569 = vmatprep.subr.mxu0 0.0
        %570 = vmatpush2.msra.mxu0 0.0
        %571 = vmatprep.subr.mxu0 0.0
        %572 = vmatpush2.msra.mxu0 0.0
        %573 = vmatprep.subr.mxu0 0.0
        %574 = vmatpush2.msra.mxu0 0.0
        %575 = vmatprep.subr.mxu0 0.0
        %576 = vmatpush2.msra.mxu0 0.0
        %577 = vmatprep.mubr.f32.mxu0 0.0
        %578 = vmatmul.mubr.f32.gmra.mxu0 %v511
        %v579 = vpop.f32.mrf.mxu0
        %v580 = vadd.f32 %v508, %v579
        %v581 = vpop.f32.mrf.mxu0
        %582 = vdwg.mxu0
        %v583 = vmul.f32 %v580, %v481
        %585 = vrot.lane.b32.xlu0 %v483, 32
        %v586 = vpop.permute.xlu0 %585
        %v588 = vmul.f32 %v580, %v586
        %590 = vrot.lane.b32.xlu0 %v588, 96
        %v591 = vpop.permute.xlu0 %590
        %v593 = vadd.f32 %v583, %v591
        %595 = vrot.lane.b32.xlu0 %v481, 64
        %v596 = vpop.permute.xlu0 %595
        %v598 = vmul.f32 %v580, %v596
        %599 = vrot.lane.b32.xlu0 %v483, 80
        %v600 = vpop.permute.xlu0 %599
        %v602 = vmul.f32 %v580, %v600
        %604 = vrot.lane.b32.xlu0 %v602, 112
        %v605 = vpop.permute.xlu0 %604
        %v607 = vadd.f32 %v598, %v605
        %v608 = vlaneseq
        %v609 = vshrl.u32 %v608, 7
        %v610 = vlaneseq
        %v611 = vand.u32 %v610, 127
        %vm612 = vcmp.le.s32.totalorder %v611, %v609
        %v613 = vstv %s471
        %vm614 = vcmp.lt.s32.totalorder %v611, %v613
        %vm615 = vmand %vm612, %vm614
        %v616 = vsel %vm615, 0.0, -1e+09
        %618 = vrot.lane.b32.xlu0 %v607, 64
        %v619 = vpop.permute.xlu0 %618
        %vm620 = vcmask 64512
        %v622 = vsel %vm620, %v593, 0
        %v624 = vsel %vm620, %v619, 0
        %626 = vmatprep.subr.mxu0 0.0
        %627 = vmatpush1.xpose.msra.mxu0 0.0
        %628 = vmatprep.subr.mxu0 0.0
        %629 = vmatpush1.xpose.msra.mxu0 0.0
        %630 = vmatprep.subr.mxu0 0.0
        %631 = vmatpush1.xpose.msra.mxu0 0.0
        %632 = vmatprep.subr.mxu0 0.0
        %633 = vmatpush1.xpose.msra.mxu0 0.0
        %634 = vmatprep.subr.mxu0 0.0
        %635 = vmatpush1.xpose.msra.mxu0 0.0
        %636 = vmatprep.subr.mxu0 0.0
        %637 = vmatpush1.xpose.msra.mxu0 0.0
        %638 = vmatprep.subr.mxu0 0.0
        %639 = vmatpush1.xpose.msra.mxu0 0.0
        %640 = vmatprep.subr.mxu0 0.0
        %641 = vmatpush1.xpose.msra.mxu0 0.0
        %642 = vmatprep.subr.mxu0 0.0
        %643 = vmatpush1.xpose.msra.mxu0 0.0
        %644 = vmatprep.subr.mxu0 0.0
        %645 = vmatpush1.xpose.msra.mxu0 0.0
        %646 = vmatprep.subr.mxu0 0.0
        %647 = vmatpush1.xpose.msra.mxu0 0.0
        %648 = vmatprep.subr.mxu0 0.0
        %649 = vmatpush1.xpose.msra.mxu0 0.0
        %650 = vmatprep.subr.mxu0 0.0
        %651 = vmatpush1.xpose.msra.mxu0 0.0
        %652 = vmatprep.subr.mxu0 0.0
        %653 = vmatpush1.xpose.msra.mxu0 0.0
        %654 = vmatprep.subr.mxu0 0.0
        %655 = vmatpush1.xpose.msra.mxu0 0.0
        %656 = vmatprep.subr.mxu0 0.0
        %657 = vmatpush1.xpose.msra.mxu0 %v624
        %658 = vmatprep.subr.mxu0 0.0
        %659 = vmatpush2.xpose.msra.mxu0 0.0
        %660 = vmatprep.subr.mxu0 0.0
        %661 = vmatpush2.xpose.msra.mxu0 0.0
        %662 = vmatprep.subr.mxu0 0.0
        %663 = vmatpush2.xpose.msra.mxu0 0.0
        %664 = vmatprep.subr.mxu0 0.0
        %665 = vmatpush2.xpose.msra.mxu0 0.0
        %666 = vmatprep.subr.mxu0 0.0
        %667 = vmatpush2.xpose.msra.mxu0 0.0
        %668 = vmatprep.subr.mxu0 0.0
        %669 = vmatpush2.xpose.msra.mxu0 0.0
        %670 = vmatprep.subr.mxu0 0.0
        %671 = vmatpush2.xpose.msra.mxu0 0.0
        %672 = vmatprep.subr.mxu0 0.0
        %673 = vmatpush2.xpose.msra.mxu0 0.0
        %674 = vmatprep.subr.mxu0 0.0
        %675 = vmatpush2.xpose.msra.mxu0 0.0
        %676 = vmatprep.subr.mxu0 0.0
        %677 = vmatpush2.xpose.msra.mxu0 0.0
        %678 = vmatprep.subr.mxu0 0.0
        %679 = vmatpush2.xpose.msra.mxu0 0.0
        %680 = vmatprep.subr.mxu0 0.0
        %681 = vmatpush2.xpose.msra.mxu0 0.0
        %682 = vmatprep.subr.mxu0 0.0
        %683 = vmatpush2.xpose.msra.mxu0 0.0
        %684 = vmatprep.subr.mxu0 0.0
        %685 = vmatpush2.xpose.msra.mxu0 0.0
        %686 = vmatprep.subr.mxu0 0.0
        %687 = vmatpush2.xpose.msra.mxu0 0.0
        %688 = vmatprep.subr.mxu0 0.0
        %689 = vmatpush2.xpose.msra.mxu0 0.0
        %690 = vmatprep.mubr.f32.mxu0 0.0
        %691 = vmatmul.mubr.f32.gmra.mxu0 %v622
        %v692 = vpop.f32.mrf.mxu0
        %v693 = vadd.f32 0.0, %v692
        %v694 = vpop.f32.mrf.mxu0
        %695 = vdwg.mxu0
        %v696 = vmul.f32 %v693, 0.35355338
        %v697 = vadd.f32 %v696, %v616
        %v698 = vsel %vm620, %v697, -inf
        %699 = vmax.xlane.f32.xlu0 %v698
        %v700 = vpop.xlane.xlu0 %699
        %v701 = vsub.f32 %v697, %v700
        %v702 = vmul.f32 %v701, 1.442695
        %v703 = vpow.pop %v702
        %v704 = vsel %vm620, %v703, 0.0
        %705 = vadd.xlane.f32.xlu0 %v704
        %v706 = vpop.xlane.xlu0 %705
        %v707 = vrcp.pop %v706
        %v708 = vmul.f32 %v703, %v707
        %710 = vrot.lane.b32.xlu0 %v580, 32
        %v711 = vpop.permute.xlu0 %710
        %v714 = vsel %vm620, %v708, 0
        %716 = vmatprep.subr.mxu0 0.0
        %717 = vmatpush1.msra.mxu0 0.0
        %718 = vmatprep.subr.mxu0 0.0
        %719 = vmatpush1.msra.mxu0 0.0
        %720 = vmatprep.subr.mxu0 0.0
        %721 = vmatpush1.msra.mxu0 0.0
        %722 = vmatprep.subr.mxu0 0.0
        %723 = vmatpush1.msra.mxu0 0.0
        %724 = vmatprep.subr.mxu0 0.0
        %725 = vmatpush1.msra.mxu0 0.0
        %726 = vmatprep.subr.mxu0 0.0
        %727 = vmatpush1.msra.mxu0 0.0
        %728 = vmatprep.subr.mxu0 0.0
        %729 = vmatpush1.msra.mxu0 0.0
        %730 = vmatprep.subr.mxu0 0.0
        %731 = vmatpush1.msra.mxu0 0.0
        %732 = vmatprep.subr.mxu0 0.0
        %733 = vmatpush1.msra.mxu0 0.0
        %734 = vmatprep.subr.mxu0 0.0
        %735 = vmatpush1.msra.mxu0 0.0
        %736 = vmatprep.subr.mxu0 0.0
        %737 = vmatpush1.msra.mxu0 0.0
        %738 = vmatprep.subr.mxu0 0.0
        %739 = vmatpush1.msra.mxu0 0.0
        %740 = vmatprep.subr.mxu0 0.0
        %741 = vmatpush1.msra.mxu0 0.0
        %742 = vmatprep.subr.mxu0 0.0
        %743 = vmatpush1.msra.mxu0 0.0
        %744 = vmatprep.subr.mxu0 0.0
        %745 = vmatpush1.msra.mxu0 0.0
        %746 = vmatprep.subr.mxu0 0.0
        %747 = vmatpush1.msra.mxu0 %v711
        %748 = vmatprep.subr.mxu0 0.0
        %749 = vmatpush2.msra.mxu0 0.0
        %750 = vmatprep.subr.mxu0 0.0
        %751 = vmatpush2.msra.mxu0 0.0
        %752 = vmatprep.subr.mxu0 0.0
        %753 = vmatpush2.msra.mxu0 0.0
        %754 = vmatprep.subr.mxu0 0.0
        %755 = vmatpush2.msra.mxu0 0.0
        %756 = vmatprep.subr.mxu0 0.0
        %757 = vmatpush2.msra.mxu0 0.0
        %758 = vmatprep.subr.mxu0 0.0
        %759 = vmatpush2.msra.mxu0 0.0
        %760 = vmatprep.subr.mxu0 0.0
        %761 = vmatpush2.msra.mxu0 0.0
        %762 = vmatprep.subr.mxu0 0.0
        %763 = vmatpush2.msra.mxu0 0.0
        %764 = vmatprep.subr.mxu0 0.0
        %765 = vmatpush2.msra.mxu0 0.0
        %766 = vmatprep.subr.mxu0 0.0
        %767 = vmatpush2.msra.mxu0 0.0
        %768 = vmatprep.subr.mxu0 0.0
        %769 = vmatpush2.msra.mxu0 0.0
        %770 = vmatprep.subr.mxu0 0.0
        %771 = vmatpush2.msra.mxu0 0.0
        %772 = vmatprep.subr.mxu0 0.0
        %773 = vmatpush2.msra.mxu0 0.0
        %774 = vmatprep.subr.mxu0 0.0
        %775 = vmatpush2.msra.mxu0 0.0
        %776 = vmatprep.subr.mxu0 0.0
        %777 = vmatpush2.msra.mxu0 0.0
        %778 = vmatprep.subr.mxu0 0.0
        %779 = vmatpush2.msra.mxu0 0.0
        %780 = vmatprep.mubr.f32.mxu0 0.0
        %781 = vmatmul.mubr.f32.gmra.mxu0 %v714
        %v782 = vpop.f32.mrf.mxu0
        %v783 = vadd.f32 0.0, %v782
        %v784 = vpop.f32.mrf.mxu0
        %785 = vdwg.mxu0
        %786 = vst.msk [vmem:[#allocation2] sm:$0xff] %vm620, %v783
        %787 = vrot.lane.b32.xlu0 %v593, 120
        %v788 = vpop.permute.xlu0 %787
        %v789 = vsel %vm620, %v788, 0
        %791 = vmatprep.subr.mxu0 0.0
        %792 = vmatpush1.xpose.msra.mxu0 0.0
        %793 = vmatprep.subr.mxu0 0.0
        %794 = vmatpush1.xpose.msra.mxu0 0.0
        %795 = vmatprep.subr.mxu0 0.0
        %796 = vmatpush1.xpose.msra.mxu0 0.0
        %797 = vmatprep.subr.mxu0 0.0
        %798 = vmatpush1.xpose.msra.mxu0 0.0
        %799 = vmatprep.subr.mxu0 0.0
        %800 = vmatpush1.xpose.msra.mxu0 0.0
        %801 = vmatprep.subr.mxu0 0.0
        %802 = vmatpush1.xpose.msra.mxu0 0.0
        %803 = vmatprep.subr.mxu0 0.0
        %804 = vmatpush1.xpose.msra.mxu0 0.0
        %805 = vmatprep.subr.mxu0 0.0
        %806 = vmatpush1.xpose.msra.mxu0 0.0
        %807 = vmatprep.subr.mxu0 0.0
        %808 = vmatpush1.xpose.msra.mxu0 0.0
        %809 = vmatprep.subr.mxu0 0.0
        %810 = vmatpush1.xpose.msra.mxu0 0.0
        %811 = vmatprep.subr.mxu0 0.0
        %812 = vmatpush1.xpose.msra.mxu0 0.0
        %813 = vmatprep.subr.mxu0 0.0
        %814 = vmatpush1.xpose.msra.mxu0 0.0
        %815 = vmatprep.subr.mxu0 0.0
        %816 = vmatpush1.xpose.msra.mxu0 0.0
        %817 = vmatprep.subr.mxu0 0.0
        %818 = vmatpush1.xpose.msra.mxu0 0.0
        %819 = vmatprep.subr.mxu0 0.0
        %820 = vmatpush1.xpose.msra.mxu0 0.0
        %821 = vmatprep.subr.mxu0 0.0
        %822 = vmatpush1.xpose.msra.mxu0 %v624
        %823 = vmatprep.subr.mxu0 0.0
        %824 = vmatpush2.xpose.msra.mxu0 0.0
        %825 = vmatprep.subr.mxu0 0.0
        %826 = vmatpush2.xpose.msra.mxu0 0.0
        %827 = vmatprep.subr.mxu0 0.0
        %828 = vmatpush2.xpose.msra.mxu0 0.0
        %829 = vmatprep.subr.mxu0 0.0
        %830 = vmatpush2.xpose.msra.mxu0 0.0
        %831 = vmatprep.subr.mxu0 0.0
        %832 = vmatpush2.xpose.msra.mxu0 0.0
        %833 = vmatprep.subr.mxu0 0.0
        %834 = vmatpush2.xpose.msra.mxu0 0.0
        %835 = vmatprep.subr.mxu0 0.0
        %836 = vmatpush2.xpose.msra.mxu0 0.0
        %837 = vmatprep.subr.mxu0 0.0
        %838 = vmatpush2.xpose.msra.mxu0 0.0
        %839 = vmatprep.subr.mxu0 0.0
        %840 = vmatpush2.xpose.msra.mxu0 0.0
        %841 = vmatprep.subr.mxu0 0.0
        %842 = vmatpush2.xpose.msra.mxu0 0.0
        %843 = vmatprep.subr.mxu0 0.0
        %844 = vmatpush2.xpose.msra.mxu0 0.0
        %845 = vmatprep.subr.mxu0 0.0
        %846 = vmatpush2.xpose.msra.mxu0 0.0
        %847 = vmatprep.subr.mxu0 0.0
        %848 = vmatpush2.xpose.msra.mxu0 0.0
        %849 = vmatprep.subr.mxu0 0.0
        %850 = vmatpush2.xpose.msra.mxu0 0.0
        %851 = vmatprep.subr.mxu0 0.0
        %852 = vmatpush2.xpose.msra.mxu0 0.0
        %853 = vmatprep.subr.mxu0 0.0
        %854 = vmatpush2.xpose.msra.mxu0 0.0
        %855 = vmatprep.mubr.f32.mxu0 0.0
        %856 = vmatmul.mubr.f32.gmra.mxu0 %v789
        %v857 = vpop.f32.mrf.mxu0
        %v858 = vadd.f32 0.0, %v857
        %v859 = vpop.f32.mrf.mxu0
        %860 = vdwg.mxu0
        %v861 = vmul.f32 %v858, 0.35355338
        %v862 = vadd.f32 %v861, %v616
        %v863 = vsel %vm620, %v862, -inf
        %864 = vmax.xlane.f32.xlu0 %v863
        %v865 = vpop.xlane.xlu0 %864
        %v866 = vsub.f32 %v862, %v865
        %v867 = vmul.f32 %v866, 1.442695
        %v868 = vpow.pop %v867
        %v869 = vsel %vm620, %v868, 0.0
        %870 = vadd.xlane.f32.xlu0 %v869
        %v871 = vpop.xlane.xlu0 %870
        %v872 = vrcp.pop %v871
        %v873 = vmul.f32 %v868, %v872
        %v875 = vsel %vm620, %v873, 0
        %877 = vmatprep.subr.mxu0 0.0
        %878 = vmatpush1.msra.mxu0 0.0
        %879 = vmatprep.subr.mxu0 0.0
        %880 = vmatpush1.msra.mxu0 0.0
        %881 = vmatprep.subr.mxu0 0.0
        %882 = vmatpush1.msra.mxu0 0.0
        %883 = vmatprep.subr.mxu0 0.0
        %884 = vmatpush1.msra.mxu0 0.0
        %885 = vmatprep.subr.mxu0 0.0
        %886 = vmatpush1.msra.mxu0 0.0
        %887 = vmatprep.subr.mxu0 0.0
        %888 = vmatpush1.msra.mxu0 0.0
        %889 = vmatprep.subr.mxu0 0.0
        %890 = vmatpush1.msra.mxu0 0.0
        %891 = vmatprep.subr.mxu0 0.0
        %892 = vmatpush1.msra.mxu0 0.0
        %893 = vmatprep.subr.mxu0 0.0
        %894 = vmatpush1.msra.mxu0 0.0
        %895 = vmatprep.subr.mxu0 0.0
        %896 = vmatpush1.msra.mxu0 0.0
        %897 = vmatprep.subr.mxu0 0.0
        %898 = vmatpush1.msra.mxu0 0.0
        %899 = vmatprep.subr.mxu0 0.0
        %900 = vmatpush1.msra.mxu0 0.0
        %901 = vmatprep.subr.mxu0 0.0
        %902 = vmatpush1.msra.mxu0 0.0
        %903 = vmatprep.subr.mxu0 0.0
        %904 = vmatpush1.msra.mxu0 0.0
        %905 = vmatprep.subr.mxu0 0.0
        %906 = vmatpush1.msra.mxu0 0.0
        %907 = vmatprep.subr.mxu0 0.0
        %908 = vmatpush1.msra.mxu0 %v711
        %909 = vmatprep.subr.mxu0 0.0
        %910 = vmatpush2.msra.mxu0 0.0
        %911 = vmatprep.subr.mxu0 0.0
        %912 = vmatpush2.msra.mxu0 0.0
        %913 = vmatprep.subr.mxu0 0.0
        %914 = vmatpush2.msra.mxu0 0.0
        %915 = vmatprep.subr.mxu0 0.0
        %916 = vmatpush2.msra.mxu0 0.0
        %917 = vmatprep.subr.mxu0 0.0
        %918 = vmatpush2.msra.mxu0 0.0
        %919 = vmatprep.subr.mxu0 0.0
        %920 = vmatpush2.msra.mxu0 0.0
        %921 = vmatprep.subr.mxu0 0.0
        %922 = vmatpush2.msra.mxu0 0.0
        %923 = vmatprep.subr.mxu0 0.0
        %924 = vmatpush2.msra.mxu0 0.0
        %925 = vmatprep.subr.mxu0 0.0
        %926 = vmatpush2.msra.mxu0 0.0
        %927 = vmatprep.subr.mxu0 0.0
        %928 = vmatpush2.msra.mxu0 0.0
        %929 = vmatprep.subr.mxu0 0.0
        %930 = vmatpush2.msra.mxu0 0.0
        %931 = vmatprep.subr.mxu0 0.0
        %932 = vmatpush2.msra.mxu0 0.0
        %933 = vmatprep.subr.mxu0 0.0
        %934 = vmatpush2.msra.mxu0 0.0
        %935 = vmatprep.subr.mxu0 0.0
        %936 = vmatpush2.msra.mxu0 0.0
        %937 = vmatprep.subr.mxu0 0.0
        %938 = vmatpush2.msra.mxu0 0.0
        %939 = vmatprep.subr.mxu0 0.0
        %940 = vmatpush2.msra.mxu0 0.0
        %941 = vmatprep.mubr.f32.mxu0 0.0
        %942 = vmatmul.mubr.f32.gmra.mxu0 %v875
        %v943 = vpop.f32.mrf.mxu0
        %v944 = vadd.f32 0.0, %v943
        %v945 = vpop.f32.mrf.mxu0
        %946 = vdwg.mxu0
        %948 = vrot.lane.b32.xlu0 %v944, 8
        %v949 = vpop.permute.xlu0 %948
        %vm951 = vcmask 130112
        %952 = vst.msk [vmem:[#allocation2] sm:$0xff] %vm951, %v949
        %953 = vrot.lane.b32.xlu0 %v593, 112
        %v954 = vpop.permute.xlu0 %953
        %955 = vrot.lane.b32.xlu0 %v607, 56
        %v956 = vpop.permute.xlu0 %955
        %v957 = vsel %vm620, %v954, 0
        %v959 = vsel %vm620, %v956, 0
        %961 = vmatprep.subr.mxu0 0.0
        %962 = vmatpush1.xpose.msra.mxu0 0.0
        %963 = vmatprep.subr.mxu0 0.0
        %964 = vmatpush1.xpose.msra.mxu0 0.0
        %965 = vmatprep.subr.mxu0 0.0
        %966 = vmatpush1.xpose.msra.mxu0 0.0
        %967 = vmatprep.subr.mxu0 0.0
        %968 = vmatpush1.xpose.msra.mxu0 0.0
        %969 = vmatprep.subr.mxu0 0.0
        %970 = vmatpush1.xpose.msra.mxu0 0.0
        %971 = vmatprep.subr.mxu0 0.0
        %972 = vmatpush1.xpose.msra.mxu0 0.0
        %973 = vmatprep.subr.mxu0 0.0
        %974 = vmatpush1.xpose.msra.mxu0 0.0
        %975 = vmatprep.subr.mxu0 0.0
        %976 = vmatpush1.xpose.msra.mxu0 0.0
        %977 = vmatprep.subr.mxu0 0.0
        %978 = vmatpush1.xpose.msra.mxu0 0.0
        %979 = vmatprep.subr.mxu0 0.0
        %980 = vmatpush1.xpose.msra.mxu0 0.0
        %981 = vmatprep.subr.mxu0 0.0
        %982 = vmatpush1.xpose.msra.mxu0 0.0
        %983 = vmatprep.subr.mxu0 0.0
        %984 = vmatpush1.xpose.msra.mxu0 0.0
        %985 = vmatprep.subr.mxu0 0.0
        %986 = vmatpush1.xpose.msra.mxu0 0.0
        %987 = vmatprep.subr.mxu0 0.0
        %988 = vmatpush1.xpose.msra.mxu0 0.0
        %989 = vmatprep.subr.mxu0 0.0
        %990 = vmatpush1.xpose.msra.mxu0 0.0
        %991 = vmatprep.subr.mxu0 0.0
        %992 = vmatpush1.xpose.msra.mxu0 %v959
        %993 = vmatprep.subr.mxu0 0.0
        %994 = vmatpush2.xpose.msra.mxu0 0.0
        %995 = vmatprep.subr.mxu0 0.0
        %996 = vmatpush2.xpose.msra.mxu0 0.0
        %997 = vmatprep.subr.mxu0 0.0
        %998 = vmatpush2.xpose.msra.mxu0 0.0
        %999 = vmatprep.subr.mxu0 0.0
        %1000 = vmatpush2.xpose.msra.mxu0 0.0
        %1001 = vmatprep.subr.mxu0 0.0
        %1002 = vmatpush2.xpose.msra.mxu0 0.0
        %1003 = vmatprep.subr.mxu0 0.0
        %1004 = vmatpush2.xpose.msra.mxu0 0.0
        %1005 = vmatprep.subr.mxu0 0.0
        %1006 = vmatpush2.xpose.msra.mxu0 0.0
        %1007 = vmatprep.subr.mxu0 0.0
        %1008 = vmatpush2.xpose.msra.mxu0 0.0
        %1009 = vmatprep.subr.mxu0 0.0
        %1010 = vmatpush2.xpose.msra.mxu0 0.0
        %1011 = vmatprep.subr.mxu0 0.0
        %1012 = vmatpush2.xpose.msra.mxu0 0.0
        %1013 = vmatprep.subr.mxu0 0.0
        %1014 = vmatpush2.xpose.msra.mxu0 0.0
        %1015 = vmatprep.subr.mxu0 0.0
        %1016 = vmatpush2.xpose.msra.mxu0 0.0
        %1017 = vmatprep.subr.mxu0 0.0
        %1018 = vmatpush2.xpose.msra.mxu0 0.0
        %1019 = vmatprep.subr.mxu0 0.0
        %1020 = vmatpush2.xpose.msra.mxu0 0.0
        %1021 = vmatprep.subr.mxu0 0.0
        %1022 = vmatpush2.xpose.msra.mxu0 0.0
        %1023 = vmatprep.subr.mxu0 0.0
        %1024 = vmatpush2.xpose.msra.mxu0 0.0
        %1025 = vmatprep.mubr.f32.mxu0 0.0
        %1026 = vmatmul.mubr.f32.gmra.mxu0 %v957
        %v1027 = vpop.f32.mrf.mxu0
        %v1028 = vadd.f32 0.0, %v1027
        %v1029 = vpop.f32.mrf.mxu0
        %1030 = vdwg.mxu0
        %v1031 = vmul.f32 %v1028, 0.35355338
        %v1032 = vadd.f32 %v1031, %v616
        %v1033 = vsel %vm620, %v1032, -inf
        %1034 = vmax.xlane.f32.xlu0 %v1033
        %v1035 = vpop.xlane.xlu0 %1034
        %v1036 = vsub.f32 %v1032, %v1035
        %v1037 = vmul.f32 %v1036, 1.442695
        %v1038 = vpow.pop %v1037
        %v1039 = vsel %vm620, %v1038, 0.0
        %1040 = vadd.xlane.f32.xlu0 %v1039
        %v1041 = vpop.xlane.xlu0 %1040
        %v1042 = vrcp.pop %v1041
        %v1043 = vmul.f32 %v1038, %v1042
        %1044 = vrot.lane.b32.xlu0 %v580, 24
        %v1045 = vpop.permute.xlu0 %1044
        %v1048 = vsel %vm620, %v1043, 0
        %1050 = vmatprep.subr.mxu0 0.0
        %1051 = vmatpush1.msra.mxu0 0.0
        %1052 = vmatprep.subr.mxu0 0.0
        %1053 = vmatpush1.msra.mxu0 0.0
        %1054 = vmatprep.subr.mxu0 0.0
        %1055 = vmatpush1.msra.mxu0 0.0
        %1056 = vmatprep.subr.mxu0 0.0
        %1057 = vmatpush1.msra.mxu0 0.0
        %1058 = vmatprep.subr.mxu0 0.0
        %1059 = vmatpush1.msra.mxu0 0.0
        %1060 = vmatprep.subr.mxu0 0.0
        %1061 = vmatpush1.msra.mxu0 0.0
        %1062 = vmatprep.subr.mxu0 0.0
        %1063 = vmatpush1.msra.mxu0 0.0
        %1064 = vmatprep.subr.mxu0 0.0
        %1065 = vmatpush1.msra.mxu0 0.0
        %1066 = vmatprep.subr.mxu0 0.0
        %1067 = vmatpush1.msra.mxu0 0.0
        %1068 = vmatprep.subr.mxu0 0.0
        %1069 = vmatpush1.msra.mxu0 0.0
        %1070 = vmatprep.subr.mxu0 0.0
        %1071 = vmatpush1.msra.mxu0 0.0
        %1072 = vmatprep.subr.mxu0 0.0
        %1073 = vmatpush1.msra.mxu0 0.0
        %1074 = vmatprep.subr.mxu0 0.0
        %1075 = vmatpush1.msra.mxu0 0.0
        %1076 = vmatprep.subr.mxu0 0.0
        %1077 = vmatpush1.msra.mxu0 0.0
        %1078 = vmatprep.subr.mxu0 0.0
        %1079 = vmatpush1.msra.mxu0 0.0
        %1080 = vmatprep.subr.mxu0 0.0
        %1081 = vmatpush1.msra.mxu0 %v1045
        %1082 = vmatprep.subr.mxu0 0.0
        %1083 = vmatpush2.msra.mxu0 0.0
        %1084 = vmatprep.subr.mxu0 0.0
        %1085 = vmatpush2.msra.mxu0 0.0
        %1086 = vmatprep.subr.mxu0 0.0
        %1087 = vmatpush2.msra.mxu0 0.0
        %1088 = vmatprep.subr.mxu0 0.0
        %1089 = vmatpush2.msra.mxu0 0.0
        %1090 = vmatprep.subr.mxu0 0.0
        %1091 = vmatpush2.msra.mxu0 0.0
        %1092 = vmatprep.subr.mxu0 0.0
        %1093 = vmatpush2.msra.mxu0 0.0
        %1094 = vmatprep.subr.mxu0 0.0
        %1095 = vmatpush2.msra.mxu0 0.0
        %1096 = vmatprep.subr.mxu0 0.0
        %1097 = vmatpush2.msra.mxu0 0.0
        %1098 = vmatprep.subr.mxu0 0.0
        %1099 = vmatpush2.msra.mxu0 0.0
        %1100 = vmatprep.subr.mxu0 0.0
        %1101 = vmatpush2.msra.mxu0 0.0
        %1102 = vmatprep.subr.mxu0 0.0
        %1103 = vmatpush2.msra.mxu0 0.0
        %1104 = vmatprep.subr.mxu0 0.0
        %1105 = vmatpush2.msra.mxu0 0.0
        %1106 = vmatprep.subr.mxu0 0.0
        %1107 = vmatpush2.msra.mxu0 0.0
        %1108 = vmatprep.subr.mxu0 0.0
        %1109 = vmatpush2.msra.mxu0 0.0
        %1110 = vmatprep.subr.mxu0 0.0
        %1111 = vmatpush2.msra.mxu0 0.0
        %1112 = vmatprep.subr.mxu0 0.0
        %1113 = vmatpush2.msra.mxu0 0.0
        %1114 = vmatprep.mubr.f32.mxu0 0.0
        %1115 = vmatmul.mubr.f32.gmra.mxu0 %v1048
        %v1116 = vpop.f32.mrf.mxu0
        %v1117 = vadd.f32 0.0, %v1116
        %v1118 = vpop.f32.mrf.mxu0
        %1119 = vdwg.mxu0
        %1121 = vrot.lane.b32.xlu0 %v1117, 16
        %v1122 = vpop.permute.xlu0 %1121
        %vm1124 = vcmask 195712
        %1125 = vst.msk [vmem:[#allocation2] sm:$0xff] %vm1124, %v1122
        %1126 = vrot.lane.b32.xlu0 %v593, 104
        %v1127 = vpop.permute.xlu0 %1126
        %v1128 = vsel %vm620, %v1127, 0
        %1130 = vmatprep.subr.mxu0 0.0
        %1131 = vmatpush1.xpose.msra.mxu0 0.0
        %1132 = vmatprep.subr.mxu0 0.0
        %1133 = vmatpush1.xpose.msra.mxu0 0.0
        %1134 = vmatprep.subr.mxu0 0.0
        %1135 = vmatpush1.xpose.msra.mxu0 0.0
        %1136 = vmatprep.subr.mxu0 0.0
        %1137 = vmatpush1.xpose.msra.mxu0 0.0
        %1138 = vmatprep.subr.mxu0 0.0
        %1139 = vmatpush1.xpose.msra.mxu0 0.0
        %1140 = vmatprep.subr.mxu0 0.0
        %1141 = vmatpush1.xpose.msra.mxu0 0.0
        %1142 = vmatprep.subr.mxu0 0.0
        %1143 = vmatpush1.xpose.msra.mxu0 0.0
        %1144 = vmatprep.subr.mxu0 0.0
        %1145 = vmatpush1.xpose.msra.mxu0 0.0
        %1146 = vmatprep.subr.mxu0 0.0
        %1147 = vmatpush1.xpose.msra.mxu0 0.0
        %1148 = vmatprep.subr.mxu0 0.0
        %1149 = vmatpush1.xpose.msra.mxu0 0.0
        %1150 = vmatprep.subr.mxu0 0.0
        %1151 = vmatpush1.xpose.msra.mxu0 0.0
        %1152 = vmatprep.subr.mxu0 0.0
        %1153 = vmatpush1.xpose.msra.mxu0 0.0
        %1154 = vmatprep.subr.mxu0 0.0
        %1155 = vmatpush1.xpose.msra.mxu0 0.0
        %1156 = vmatprep.subr.mxu0 0.0
        %1157 = vmatpush1.xpose.msra.mxu0 0.0
        %1158 = vmatprep.subr.mxu0 0.0
        %1159 = vmatpush1.xpose.msra.mxu0 0.0
        %1160 = vmatprep.subr.mxu0 0.0
        %1161 = vmatpush1.xpose.msra.mxu0 %v959
        %1162 = vmatprep.subr.mxu0 0.0
        %1163 = vmatpush2.xpose.msra.mxu0 0.0
        %1164 = vmatprep.subr.mxu0 0.0
        %1165 = vmatpush2.xpose.msra.mxu0 0.0
        %1166 = vmatprep.subr.mxu0 0.0
        %1167 = vmatpush2.xpose.msra.mxu0 0.0
        %1168 = vmatprep.subr.mxu0 0.0
        %1169 = vmatpush2.xpose.msra.mxu0 0.0
        %1170 = vmatprep.subr.mxu0 0.0
        %1171 = vmatpush2.xpose.msra.mxu0 0.0
        %1172 = vmatprep.subr.mxu0 0.0
        %1173 = vmatpush2.xpose.msra.mxu0 0.0
        %1174 = vmatprep.subr.mxu0 0.0
        %1175 = vmatpush2.xpose.msra.mxu0 0.0
        %1176 = vmatprep.subr.mxu0 0.0
        %1177 = vmatpush2.xpose.msra.mxu0 0.0
        %1178 = vmatprep.subr.mxu0 0.0
        %1179 = vmatpush2.xpose.msra.mxu0 0.0
        %1180 = vmatprep.subr.mxu0 0.0
        %1181 = vmatpush2.xpose.msra.mxu0 0.0
        %1182 = vmatprep.subr.mxu0 0.0
        %1183 = vmatpush2.xpose.msra.mxu0 0.0
        %1184 = vmatprep.subr.mxu0 0.0
        %1185 = vmatpush2.xpose.msra.mxu0 0.0
        %1186 = vmatprep.subr.mxu0 0.0
        %1187 = vmatpush2.xpose.msra.mxu0 0.0
        %1188 = vmatprep.subr.mxu0 0.0
        %1189 = vmatpush2.xpose.msra.mxu0 0.0
        %1190 = vmatprep.subr.mxu0 0.0
        %1191 = vmatpush2.xpose.msra.mxu0 0.0
        %1192 = vmatprep.subr.mxu0 0.0
        %1193 = vmatpush2.xpose.msra.mxu0 0.0
        %1194 = vmatprep.mubr.f32.mxu0 0.0
        %1195 = vmatmul.mubr.f32.gmra.mxu0 %v1128
        %v1196 = vpop.f32.mrf.mxu0
        %v1197 = vadd.f32 0.0, %v1196
        %v1198 = vpop.f32.mrf.mxu0
        %1199 = vdwg.mxu0
        %v1200 = vmul.f32 %v1197, 0.35355338
        %v1201 = vadd.f32 %v1200, %v616
        %v1202 = vsel %vm620, %v1201, -inf
        %1203 = vmax.xlane.f32.xlu0 %v1202
        %v1204 = vpop.xlane.xlu0 %1203
        %v1205 = vsub.f32 %v1201, %v1204
        %v1206 = vmul.f32 %v1205, 1.442695
        %v1207 = vpow.pop %v1206
        %v1208 = vsel %vm620, %v1207, 0.0
        %1209 = vadd.xlane.f32.xlu0 %v1208
        %v1210 = vpop.xlane.xlu0 %1209
        %v1211 = vrcp.pop %v1210
        %v1212 = vmul.f32 %v1207, %v1211
        %v1214 = vsel %vm620, %v1212, 0
        %1216 = vmatprep.subr.mxu0 0.0
        %1217 = vmatpush1.msra.mxu0 0.0
        %1218 = vmatprep.subr.mxu0 0.0
        %1219 = vmatpush1.msra.mxu0 0.0
        %1220 = vmatprep.subr.mxu0 0.0
        %1221 = vmatpush1.msra.mxu0 0.0
        %1222 = vmatprep.subr.mxu0 0.0
        %1223 = vmatpush1.msra.mxu0 0.0
        %1224 = vmatprep.subr.mxu0 0.0
        %1225 = vmatpush1.msra.mxu0 0.0
        %1226 = vmatprep.subr.mxu0 0.0
        %1227 = vmatpush1.msra.mxu0 0.0
        %1228 = vmatprep.subr.mxu0 0.0
        %1229 = vmatpush1.msra.mxu0 0.0
        %1230 = vmatprep.subr.mxu0 0.0
        %1231 = vmatpush1.msra.mxu0 0.0
        %1232 = vmatprep.subr.mxu0 0.0
        %1233 = vmatpush1.msra.mxu0 0.0
        %1234 = vmatprep.subr.mxu0 0.0
        %1235 = vmatpush1.msra.mxu0 0.0
        %1236 = vmatprep.subr.mxu0 0.0
        %1237 = vmatpush1.msra.mxu0 0.0
        %1238 = vmatprep.subr.mxu0 0.0
        %1239 = vmatpush1.msra.mxu0 0.0
        %1240 = vmatprep.subr.mxu0 0.0
        %1241 = vmatpush1.msra.mxu0 0.0
        %1242 = vmatprep.subr.mxu0 0.0
        %1243 = vmatpush1.msra.mxu0 0.0
        %1244 = vmatprep.subr.mxu0 0.0
        %1245 = vmatpush1.msra.mxu0 0.0
        %1246 = vmatprep.subr.mxu0 0.0
        %1247 = vmatpush1.msra.mxu0 %v1045
        %1248 = vmatprep.subr.mxu0 0.0
        %1249 = vmatpush2.msra.mxu0 0.0
        %1250 = vmatprep.subr.mxu0 0.0
        %1251 = vmatpush2.msra.mxu0 0.0
        %1252 = vmatprep.subr.mxu0 0.0
        %1253 = vmatpush2.msra.mxu0 0.0
        %1254 = vmatprep.subr.mxu0 0.0
        %1255 = vmatpush2.msra.mxu0 0.0
        %1256 = vmatprep.subr.mxu0 0.0
        %1257 = vmatpush2.msra.mxu0 0.0
        %1258 = vmatprep.subr.mxu0 0.0
        %1259 = vmatpush2.msra.mxu0 0.0
        %1260 = vmatprep.subr.mxu0 0.0
        %1261 = vmatpush2.msra.mxu0 0.0
        %1262 = vmatprep.subr.mxu0 0.0
        %1263 = vmatpush2.msra.mxu0 0.0
        %1264 = vmatprep.subr.mxu0 0.0
        %1265 = vmatpush2.msra.mxu0 0.0
        %1266 = vmatprep.subr.mxu0 0.0
        %1267 = vmatpush2.msra.mxu0 0.0
        %1268 = vmatprep.subr.mxu0 0.0
        %1269 = vmatpush2.msra.mxu0 0.0
        %1270 = vmatprep.subr.mxu0 0.0
        %1271 = vmatpush2.msra.mxu0 0.0
        %1272 = vmatprep.subr.mxu0 0.0
        %1273 = vmatpush2.msra.mxu0 0.0
        %1274 = vmatprep.subr.mxu0 0.0
        %1275 = vmatpush2.msra.mxu0 0.0
        %1276 = vmatprep.subr.mxu0 0.0
        %1277 = vmatpush2.msra.mxu0 0.0
        %1278 = vmatprep.subr.mxu0 0.0
        %1279 = vmatpush2.msra.mxu0 0.0
        %1280 = vmatprep.mubr.f32.mxu0 0.0
        %1281 = vmatmul.mubr.f32.gmra.mxu0 %v1214
        %v1282 = vpop.f32.mrf.mxu0
        %v1283 = vadd.f32 0.0, %v1282
        %v1284 = vpop.f32.mrf.mxu0
        %1285 = vdwg.mxu0
        %1287 = vrot.lane.b32.xlu0 %v1283, 24
        %v1288 = vpop.permute.xlu0 %1287
        %vm1290 = vcmask 261312
        %1291 = vst.msk [vmem:[#allocation2] sm:$0xff] %vm1290, %v1288
        %v1292 = vld [vmem:[#allocation2] sm:$0xff]
        %v1293 = vld [vmem:[%s382] sm:$0xff]
        %v1294 = vld [vmem:[%s382 + $0x8] sm:$0xff]
        %v1295 = vld [vmem:[%s382 + $0x10] sm:$0xff]
        %v1296 = vld [vmem:[%s382 + $0x18] sm:$0xff]
        %v1298 = vsel %vm485, %v1292, 0
        %1300 = vmatprep.subr.mxu0 0.0
        %1301 = vmatpush1.msra.mxu0 0.0
        %1302 = vmatprep.subr.mxu0 0.0
        %1303 = vmatpush1.msra.mxu0 0.0
        %1304 = vmatprep.subr.mxu0 0.0
        %1305 = vmatpush1.msra.mxu0 0.0
        %1306 = vmatprep.subr.mxu0 0.0
        %1307 = vmatpush1.msra.mxu0 0.0
        %1308 = vmatprep.subr.mxu0 0.0
        %1309 = vmatpush1.msra.mxu0 0.0
        %1310 = vmatprep.subr.mxu0 0.0
        %1311 = vmatpush1.msra.mxu0 0.0
        %1312 = vmatprep.subr.mxu0 0.0
        %1313 = vmatpush1.msra.mxu0 0.0
        %1314 = vmatprep.subr.mxu0 0.0
        %1315 = vmatpush1.msra.mxu0 0.0
        %1316 = vmatprep.subr.mxu0 0.0
        %1317 = vmatpush1.msra.mxu0 0.0
        %1318 = vmatprep.subr.mxu0 0.0
        %1319 = vmatpush1.msra.mxu0 0.0
        %1320 = vmatprep.subr.mxu0 0.0
        %1321 = vmatpush1.msra.mxu0 0.0
        %1322 = vmatprep.subr.mxu0 0.0
        %1323 = vmatpush1.msra.mxu0 0.0
        %1324 = vmatprep.subr.mxu0 0.0
        %1325 = vmatpush1.msra.mxu0 %v1296
        %1326 = vmatprep.subr.mxu0 0.0
        %1327 = vmatpush1.msra.mxu0 %v1295
        %1328 = vmatprep.subr.mxu0 0.0
        %1329 = vmatpush1.msra.mxu0 %v1294
        %1330 = vmatprep.subr.mxu0 0.0
        %1331 = vmatpush1.msra.mxu0 %v1293
        %1332 = vmatprep.subr.mxu0 0.0
        %1333 = vmatpush2.msra.mxu0 0.0
        %1334 = vmatprep.subr.mxu0 0.0
        %1335 = vmatpush2.msra.mxu0 0.0
        %1336 = vmatprep.subr.mxu0 0.0
        %1337 = vmatpush2.msra.mxu0 0.0
        %1338 = vmatprep.subr.mxu0 0.0
        %1339 = vmatpush2.msra.mxu0 0.0
        %1340 = vmatprep.subr.mxu0 0.0
        %1341 = vmatpush2.msra.mxu0 0.0
        %1342 = vmatprep.subr.mxu0 0.0
        %1343 = vmatpush2.msra.mxu0 0.0
        %1344 = vmatprep.subr.mxu0 0.0
        %1345 = vmatpush2.msra.mxu0 0.0
        %1346 = vmatprep.subr.mxu0 0.0
        %1347 = vmatpush2.msra.mxu0 0.0
        %1348 = vmatprep.subr.mxu0 0.0
        %1349 = vmatpush2.msra.mxu0 0.0
        %1350 = vmatprep.subr.mxu0 0.0
        %1351 = vmatpush2.msra.mxu0 0.0
        %1352 = vmatprep.subr.mxu0 0.0
        %1353 = vmatpush2.msra.mxu0 0.0
        %1354 = vmatprep.subr.mxu0 0.0
        %1355 = vmatpush2.msra.mxu0 0.0
        %1356 = vmatprep.subr.mxu0 0.0
        %1357 = vmatpush2.msra.mxu0 0.0
        %1358 = vmatprep.subr.mxu0 0.0
        %1359 = vmatpush2.msra.mxu0 0.0
        %1360 = vmatprep.subr.mxu0 0.0
        %1361 = vmatpush2.msra.mxu0 0.0
        %1362 = vmatprep.subr.mxu0 0.0
        %1363 = vmatpush2.msra.mxu0 0.0
        %1364 = vmatprep.mubr.f32.mxu0 0.0
        %1365 = vmatmul.mubr.f32.gmra.mxu0 %v1298
        %v1366 = vpop.f32.mrf.mxu0
        %v1367 = vadd.f32 0.0, %v1366
        %v1368 = vpop.f32.mrf.mxu0
        %1369 = vdwg.mxu0
        %v1370 = vadd.f32 %v479, %v1367
        %v1371 = vmul.f32 %v1370, %v1370
        %v1372 = vsel %vm485, %v1371, 0.0
        %1373 = vadd.xlane.f32.xlu0 %v1372
        %v1374 = vpop.xlane.xlu0 %1373
        %v1375 = vmul.f32 %v1374, %v489
        %v1376 = vadd.f32 %v1375, 1e-06
        %v1377 = vrsqrt.pop %v1376
        %v1378 = vmul.f32 %v1370, %v1377
        %v1379 = vlaneseq
        %v1380 = vshrl.u32 %v1379, 7
        %v1381 = vsub.s32 1, %v1380
        %v1382 = vrot.slane %v480, %v1381
        %v1383 = vmul.f32 %v1378, %v1382
        %v1384 = vld [vmem:[%s391] sm:$0xff]
        %v1385 = vld [vmem:[%s391 + $0x8] sm:$0xff]
        %v1386 = vld [vmem:[%s391 + $0x10] sm:$0xff]
        %v1387 = vld [vmem:[%s391 + $0x18] sm:$0xff]
        %v1389 = vsel %vm485, %v1383, 0
        %1391 = vmatprep.subr.mxu0 0.0
        %1392 = vmatpush1.msra.mxu0 0.0
        %1393 = vmatprep.subr.mxu0 0.0
        %1394 = vmatpush1.msra.mxu0 0.0
        %1395 = vmatprep.subr.mxu0 0.0
        %1396 = vmatpush1.msra.mxu0 0.0
        %1397 = vmatprep.subr.mxu0 0.0
        %1398 = vmatpush1.msra.mxu0 0.0
        %1399 = vmatprep.subr.mxu0 0.0
        %1400 = vmatpush1.msra.mxu0 0.0
        %1401 = vmatprep.subr.mxu0 0.0
        %1402 = vmatpush1.msra.mxu0 0.0
        %1403 = vmatprep.subr.mxu0 0.0
        %1404 = vmatpush1.msra.mxu0 0.0
        %1405 = vmatprep.subr.mxu0 0.0
        %1406 = vmatpush1.msra.mxu0 0.0
        %1407 = vmatprep.subr.mxu0 0.0
        %1408 = vmatpush1.msra.mxu0 0.0
        %1409 = vmatprep.subr.mxu0 0.0
        %1410 = vmatpush1.msra.mxu0 0.0
        %1411 = vmatprep.subr.mxu0 0.0
        %1412 = vmatpush1.msra.mxu0 0.0
        %1413 = vmatprep.subr.mxu0 0.0
        %1414 = vmatpush1.msra.mxu0 0.0
        %1415 = vmatprep.subr.mxu0 0.0
        %1416 = vmatpush1.msra.mxu0 %v1387
        %1417 = vmatprep.subr.mxu0 0.0
        %1418 = vmatpush1.msra.mxu0 %v1386
        %1419 = vmatprep.subr.mxu0 0.0
        %1420 = vmatpush1.msra.mxu0 %v1385
        %1421 = vmatprep.subr.mxu0 0.0
        %1422 = vmatpush1.msra.mxu0 %v1384
        %1423 = vmatprep.subr.mxu0 0.0
        %1424 = vmatpush2.msra.mxu0 0.0
        %1425 = vmatprep.subr.mxu0 0.0
        %1426 = vmatpush2.msra.mxu0 0.0
        %1427 = vmatprep.subr.mxu0 0.0
        %1428 = vmatpush2.msra.mxu0 0.0
        %1429 = vmatprep.subr.mxu0 0.0
        %1430 = vmatpush2.msra.mxu0 0.0
        %1431 = vmatprep.subr.mxu0 0.0
        %1432 = vmatpush2.msra.mxu0 0.0
        %1433 = vmatprep.subr.mxu0 0.0
        %1434 = vmatpush2.msra.mxu0 0.0
        %1435 = vmatprep.subr.mxu0 0.0
        %1436 = vmatpush2.msra.mxu0 0.0
        %1437 = vmatprep.subr.mxu0 0.0
        %1438 = vmatpush2.msra.mxu0 0.0
        %1439 = vmatprep.subr.mxu0 0.0
        %1440 = vmatpush2.msra.mxu0 0.0
        %1441 = vmatprep.subr.mxu0 0.0
        %1442 = vmatpush2.msra.mxu0 0.0
        %1443 = vmatprep.subr.mxu0 0.0
        %1444 = vmatpush2.msra.mxu0 0.0
        %1445 = vmatprep.subr.mxu0 0.0
        %1446 = vmatpush2.msra.mxu0 0.0
        %1447 = vmatprep.subr.mxu0 0.0
        %1448 = vmatpush2.msra.mxu0 0.0
        %1449 = vmatprep.subr.mxu0 0.0
        %1450 = vmatpush2.msra.mxu0 0.0
        %1451 = vmatprep.subr.mxu0 0.0
        %1452 = vmatpush2.msra.mxu0 0.0
        %1453 = vmatprep.subr.mxu0 0.0
        %1454 = vmatpush2.msra.mxu0 0.0
        %1455 = vmatprep.mubr.f32.mxu0 0.0
        %1456 = vmatmul.mubr.f32.gmra.mxu0 %v1389
        %v1457 = vpop.f32.mrf.mxu0
        %v1458 = vadd.f32 0.0, %v1457
        %v1459 = vpop.f32.mrf.mxu0
        %1460 = vdwg.mxu0
        %v1461 = vxor.u32 %v1458, 2147483648
        %v1462 = vmul.f32 %v1461, 1.442695
        %v1463 = vpow.pop %v1462
        %v1464 = vadd.f32 %v1463, 1.0
        %v1465 = vrcp.pop %v1464
        %v1466 = vmul.f32 1.0, %v1465
        %v1467 = vmul.f32 %v1458, %v1466
        %1469 = vrot.lane.b32.xlu0 %v1458, 64
        %v1470 = vpop.permute.xlu0 %1469
        %v1472 = vmul.f32 %v1467, %v1470
        %v1473 = vld [vmem:[%s470] sm:$0xff]
        %v1474 = vld [vmem:[%s470 + $0x8] sm:$0xff]
        %v1475 = vld [vmem:[%s470 + $0x10] sm:$0xff]
        %v1476 = vld [vmem:[%s470 + $0x18] sm:$0xff]
        %v1477 = vld [vmem:[%s470 + $0x20] sm:$0xff]
        %v1478 = vld [vmem:[%s470 + $0x28] sm:$0xff]
        %v1479 = vld [vmem:[%s470 + $0x30] sm:$0xff]
        %v1480 = vld [vmem:[%s470 + $0x38] sm:$0xff]
        %vm1481 = vcmask 523264
        %v1483 = vsel %vm1481, %v1472, 0
        %1485 = vmatprep.subr.mxu0 0.0
        %1486 = vmatpush1.msra.mxu0 0.0
        %1487 = vmatprep.subr.mxu0 0.0
        %1488 = vmatpush1.msra.mxu0 0.0
        %1489 = vmatprep.subr.mxu0 0.0
        %1490 = vmatpush1.msra.mxu0 0.0
        %1491 = vmatprep.subr.mxu0 0.0
        %1492 = vmatpush1.msra.mxu0 0.0
        %1493 = vmatprep.subr.mxu0 0.0
        %1494 = vmatpush1.msra.mxu0 0.0
        %1495 = vmatprep.subr.mxu0 0.0
        %1496 = vmatpush1.msra.mxu0 0.0
        %1497 = vmatprep.subr.mxu0 0.0
        %1498 = vmatpush1.msra.mxu0 0.0
        %1499 = vmatprep.subr.mxu0 0.0
        %1500 = vmatpush1.msra.mxu0 0.0
        %1501 = vmatprep.subr.mxu0 0.0
        %1502 = vmatpush1.msra.mxu0 %v1480
        %1503 = vmatprep.subr.mxu0 0.0
        %1504 = vmatpush1.msra.mxu0 %v1479
        %1505 = vmatprep.subr.mxu0 0.0
        %1506 = vmatpush1.msra.mxu0 %v1478
        %1507 = vmatprep.subr.mxu0 0.0
        %1508 = vmatpush1.msra.mxu0 %v1477
        %1509 = vmatprep.subr.mxu0 0.0
        %1510 = vmatpush1.msra.mxu0 %v1476
        %1511 = vmatprep.subr.mxu0 0.0
        %1512 = vmatpush1.msra.mxu0 %v1475
        %1513 = vmatprep.subr.mxu0 0.0
        %1514 = vmatpush1.msra.mxu0 %v1474
        %1515 = vmatprep.subr.mxu0 0.0
        %1516 = vmatpush1.msra.mxu0 %v1473
        %1517 = vmatprep.subr.mxu0 0.0
        %1518 = vmatpush2.msra.mxu0 0.0
        %1519 = vmatprep.subr.mxu0 0.0
        %1520 = vmatpush2.msra.mxu0 0.0
        %1521 = vmatprep.subr.mxu0 0.0
        %1522 = vmatpush2.msra.mxu0 0.0
        %1523 = vmatprep.subr.mxu0 0.0
        %1524 = vmatpush2.msra.mxu0 0.0
        %1525 = vmatprep.subr.mxu0 0.0
        %1526 = vmatpush2.msra.mxu0 0.0
        %1527 = vmatprep.subr.mxu0 0.0
        %1528 = vmatpush2.msra.mxu0 0.0
        %1529 = vmatprep.subr.mxu0 0.0
        %1530 = vmatpush2.msra.mxu0 0.0
        %1531 = vmatprep.subr.mxu0 0.0
        %1532 = vmatpush2.msra.mxu0 0.0
        %1533 = vmatprep.subr.mxu0 0.0
        %1534 = vmatpush2.msra.mxu0 0.0
        %1535 = vmatprep.subr.mxu0 0.0
        %1536 = vmatpush2.msra.mxu0 0.0
        %1537 = vmatprep.subr.mxu0 0.0
        %1538 = vmatpush2.msra.mxu0 0.0
        %1539 = vmatprep.subr.mxu0 0.0
        %1540 = vmatpush2.msra.mxu0 0.0
        %1541 = vmatprep.subr.mxu0 0.0
        %1542 = vmatpush2.msra.mxu0 0.0
        %1543 = vmatprep.subr.mxu0 0.0
        %1544 = vmatpush2.msra.mxu0 0.0
        %1545 = vmatprep.subr.mxu0 0.0
        %1546 = vmatpush2.msra.mxu0 0.0
        %1547 = vmatprep.subr.mxu0 0.0
        %1548 = vmatpush2.msra.mxu0 0.0
        %1549 = vmatprep.mubr.f32.mxu0 0.0
        %1550 = vmatmul.mubr.f32.gmra.mxu0 %v1483
        %v1551 = vpop.f32.mrf.mxu0
        %v1552 = vadd.f32 0.0, %v1551
        %v1553 = vpop.f32.mrf.mxu0
        %1554 = vdwg.mxu0
        %v1555 = vadd.f32 %v1370, %v1552
        %p1556 = scmp.lt.s32.totalorder %s40, 1
        // Predicated region
        $region65: #{qwen2_encoder_forward.1} parent=51 // pred_check
          %p1557 = pneg %p1556
        $region66: #{qwen2_encoder_forward.1} parent=51 // pred_check_branch
          %1559 = sbr.rel (%p1557) target = $region68
        $region67: #{qwen2_encoder_forward.1} parent=51 // pred_region
          %1560 = vst.msk [vmem:[%s449] sm:$0xff] %vm485, %v1555
        $region68: #{qwen2_encoder_forward.1} parent=51 // pred_fallthru
          _
        %p1561 = scmp.eq.s32.totalorder %s40, 1
        // Predicated region
        $region69: #{qwen2_encoder_forward.1} parent=51 // pred_check
          %p1562 = pneg %p1561
        $region70: #{qwen2_encoder_forward.1} parent=51 // pred_check_branch
          %1564 = sbr.rel (%p1562) target = $region72
        $region71: #{qwen2_encoder_forward.1} parent=51 // pred_region
          %v1565 = vmul.f32 %v1555, %v1555
          %v1566 = vsel %vm485, %v1565, 0.0
          %1567 = vadd.xlane.f32.xlu0 %v1566
          %v1568 = vpop.xlane.xlu0 %1567
          %v1569 = vmul.f32 %v1568, %v489
          %v1570 = vadd.f32 %v1569, 1e-06
          %v1571 = vrsqrt.pop %v1570
          %v1572 = vmul.f32 %v1555, %v1571
          %v1573 = vlaneseq
          %v1574 = vshrl.u32 %v1573, 7
          %v1575 = vsub.s32 2, %v1574
          %v1576 = vrot.slane %v480, %v1575
          %v1577 = vmul.f32 %v1572, %v1576
          %1578 = vst.msk [vmem:[%s449] sm:$0xff] %vm485, %v1577
        $region72: #{qwen2_encoder_forward.1} parent=51 // pred_fallthru
          _
        %s1579 = sand.u32 %s258, 1
        %s1580 = scalar_lea.sflag [#allocation7], %s1579
        %s1581 = sand.u32 %s258, 1
        %s1582 = smul.addr %s1581, 8
        %s1583 = scalar_lea.vmem [#allocation10], %s1582
        // Predicated region
        $region73: #{qwen2_encoder_forward.1} parent=51 // pred_check
          %p1584 = pneg %p268
        $region74: #{qwen2_encoder_forward.1} parent=51 // pred_check_branch
          %1586 = sbr.rel (%p1584) target = $region76
        $region75: #{qwen2_encoder_forward.1} parent=51 // pred_region
          %s1588 = ssub.s32 128, 128
          %1589 = vsyncadd %s1580, %s1588
          %s1590 = smul.addr %s39, 128
          %s1591 = scalar_lea.hbm %s9, %s1590
          %s1593 = sshll.u32 %s1583, 4
          %s1594 = int_to_ptr.vmem [resolvable:$true] %s1593
          %1596 = dma.vmem_to_hbm [thread:$0]  %s1594, 128, %s1591, %s1580
        $region76: #{qwen2_encoder_forward.1} parent=51 // pred_fallthru
          _
      $region52: #{qwen2_encoder_forward.1} parent=5 // pred_fallthru
        _
      %p1597 = scmp.le.s32.totalorder 2, %s30
      // Predicated region
      $region77: #{qwen2_encoder_forward.1} parent=5 // pred_check
        %p1598 = pneg %p1597
      $region78: #{qwen2_encoder_forward.1} parent=5 // pred_check_branch
        %1600 = sbr.rel (%p1598) target = $region80
      $region79: #{qwen2_encoder_forward.1} parent=5 // pred_region
        %s1601 = ssub.s32 %s30, 2
        // Predicated region
        $region81: #{qwen2_encoder_forward.1} parent=79 // pred_check
          %p1602 = pneg %p274
        $region82: #{qwen2_encoder_forward.1} parent=79 // pred_check_branch
          %1604 = sbr.rel (%p1602) target = $region84
        $region83: #{qwen2_encoder_forward.1} parent=79 // pred_region
          %s1605 = sand.u32 %s259, 1
          %s1606 = scalar_lea.sflag [#allocation7], %s1605
          %s1607 = sand.u32 %s259, 1
          %s1608 = smul.addr %s1607, 8
          %s1609 = scalar_lea.vmem [#allocation10], %s1608
          %1610 = dma.done %s1606, 128
        $region84: #{qwen2_encoder_forward.1} parent=79 // pred_fallthru
          _
      $region80: #{qwen2_encoder_forward.1} parent=5 // pred_fallthru
        _
    $region6: #{qwen2_encoder_forward.1} parent=1 // loop_footer
      %s34 = sadd.s32 1, %s30
    $region7: #{qwen2_encoder_forward.1} parent=1 // loop_footer_branch
      %29 = sbr.rel target = $region3
    $region8: #{qwen2_encoder_forward.1} parent=1 // loop_exit
      _
    %1611 = vsyncpa [#allocation6], 1
    %s1612 = scalar_lea.sflag [#allocation6], 1
    %1613 = vsyncpa %s1612, 1
    %1614 = vsyncpa [#allocation9], 1
    %s1615 = scalar_lea.sflag [#allocation9], 1
    %1616 = vsyncpa %s1615, 1
    %1617 = vsyncpa [#allocation7], 1
    %s1618 = scalar_lea.sflag [#allocation7], 1
    %1619 = vsyncpa %s1618, 1

</llo_original>
